<compile_context>
chip_gen: v7x
topology: tpu7x:2x2x1
jax: 0.10.0
libtpu: 0.0.40
codegen_flags: <defaults>
</compile_context>

<pallas_src>
import functools

import jax
import jax.numpy as jnp
from jax import lax
from jax.experimental import pallas as pl
from jax.experimental.pallas import tpu as pltpu


def _round_up(x, m):
    return ((x + m - 1) // m) * m


def attention_kernel(x_ref,
                     wqkv_ref, bqkv_ref,
                     w0_ref, b0_ref,
                     w1_ref, b1_ref,
                     o_ref, *, h_real):
    bt, s, d = x_ref.shape
    hp = o_ref.shape[-1]          # padded feature dim (multiple of 128)
    n_real = s * h_real           # true normalization count for the joint LN

    # Column mask for padded feature lanes (constant; folded at compile time).
    if hp != h_real:
        col = lax.broadcasted_iota(jnp.int32, (1, 1, hp), 2)
        feat_mask = (col < h_real).astype(jnp.float32)
    else:
        feat_mask = None

    def layer_norm(h, eps=1e-5):
        # Joint LN over (S, H_real) per batch element.  Padded lanes of `h`
        # are exactly zero, so single-pass sums stay exact with n = S*H_real.
        s1 = jnp.sum(h, axis=(1, 2), keepdims=True)
        s2 = jnp.sum(h * h, axis=(1, 2), keepdims=True)
        mean = s1 / n_real
        var = jnp.maximum(s2 / n_real - mean * mean, 0.0)
        out = (h - mean) * lax.rsqrt(var + eps)
        if feat_mask is not None:
            out = out * feat_mask          # re-zero padded lanes
        return out

    # ---- fused QKV projection: one (bt*S, D) @ (D, 3*Hp) MXU push ----------
    xb = x_ref[...].astype(jnp.bfloat16).reshape(bt * s, d)
    qkv = jnp.dot(xb, wqkv_ref[...], preferred_element_type=jnp.float32)
    qkv = (qkv + bqkv_ref[...]).reshape(bt, s, 3 * hp)
    # 128-lane aligned slices (hp % 128 == 0) → zero-cost views.
    q = qkv[:, :, :hp]              # unscaled (residual uses it)
    k = qkv[:, :, hp:2 * hp]        # 1/sqrt(H) already folded into wk / bk
    v = qkv[:, :, 2 * hp:]

    # ---- scaled dot-product attention --------------------------------------
    scores = lax.dot_general(
        q.astype(jnp.bfloat16), k.astype(jnp.bfloat16),
        dimension_numbers=(((2,), (2,)), ((0,), (0,))),
        preferred_element_type=jnp.float32)           # (bt, S, S)

    m = jnp.max(scores, axis=-1, keepdims=True)
    e = jnp.exp(scores - m)                           # f32 (bt, S, S)
    denom = jnp.sum(e, axis=-1, keepdims=True)        # f32 (bt, S, 1)
    eb = e.astype(jnp.bfloat16)                       # only bf16 copy stays live

    ws = lax.dot_general(
        eb, v.astype(jnp.bfloat16),
        dimension_numbers=(((2,), (1,)), ((0,), (0,))),
        preferred_element_type=jnp.float32)           # (bt, S, Hp)
    ws = ws * (1.0 / denom)     # deferred, exact softmax normalization: O(S*Hp)

    # ---- residual + joint layer-norm ---------------------------------------
    h = layer_norm(ws + q)

    # ---- FFN on the flattened (bt*S, Hp) slab -------------------------------
    hb = h.astype(jnp.bfloat16).reshape(bt * s, hp)
    d0 = jnp.dot(hb, w0_ref[...], preferred_element_type=jnp.float32) + b0_ref[...]
    d0 = jnp.maximum(d0, 0.0)
    f1 = jnp.dot(d0.astype(jnp.bfloat16), w1_ref[...],
                 preferred_element_type=jnp.float32) + b1_ref[...]

    h = layer_norm(h + f1.reshape(bt, s, hp))

    # Lane-dense (Hp % 128 == 0) unmasked store.
    o_ref[...] = h.astype(o_ref.dtype)


def _pick_batch_tile(B, S, D, Hp, Fp, vmem_budget, target_rows=512):
    """Largest divisor bt of B whose per-step working set fits the VMEM budget.

    Capped so the batch grid has >= 2 steps whenever B >= 2 (keeps both
    TensorCores busy on v7x; ~free on single-TC v5e/v6e at these sizes)."""
    w_bytes = (D * 3 * Hp + Hp * Fp + Fp * Hp) * 2 + (3 * Hp + Fp + Hp) * 4

    def step_bytes(bt):
        rows = bt * S
        io = 2 * rows * D * 4 + 2 * rows * Hp * 4     # double-buffered x / out
        act = rows * 3 * Hp * 4                        # qkv
        act += bt * S * S * (4 + 2)                    # scores f32 + e bf16
        act += rows * Hp * 4 * 3                       # q / ws / h working copies
        act += rows * Fp * 4                           # d0
        return io + act

    budget = max(vmem_budget - 2 * w_bytes, 0)         # conservative: 2x weights
    best = 1
    for cand in range(1, B + 1):
        if B % cand:
            continue
        if cand * S <= max(target_rows, S) and step_bytes(cand) <= budget:
            best = cand
    if B >= 2 and best == B:                           # keep >= 2 grid steps
        for cand in range(B // 2, 0, -1):
            if B % cand == 0:
                best = cand
                break
    return best


def attention_layer(x, params, *, bt=None):
    """x: (B, S, D) float32; params: dict of pre-transposed f32 weights / biases."""
    B, S, D = x.shape
    H = params["wq"].shape[1]
    F = params["w0"].shape[1]
    Hp = _round_up(H, 128)     # lane-aligned feature dim
    Fp = _round_up(F, 128)     # lane-aligned FFN hidden dim

    pad_cols = lambda w, to: jnp.pad(w, ((0, 0), (0, to - w.shape[1])))
    pad_rows = lambda w, to: jnp.pad(w, ((0, to - w.shape[0]), (0, 0)))

    # Fused QKV weight, each group padded to a 128-lane boundary; 1/sqrt(H)
    # folded into the K group (K is only used in the score matmul).
    scale = 1.0 / (H ** 0.5)
    wqkv = jnp.concatenate(
        [pad_cols(params["wq"], Hp),
         pad_cols(params["wk"] * scale, Hp),
         pad_cols(params["wv"], Hp)], axis=1).astype(jnp.bfloat16)      # (D, 3Hp)
    bqkv = jnp.concatenate(
        [pad_cols(params["bq"], Hp),
         pad_cols(params["bk"] * scale, Hp),
         pad_cols(params["bv"], Hp)], axis=1).astype(jnp.float32)        # (1, 3Hp)
    w0 = pad_rows(pad_cols(params["w0"], Fp), Hp).astype(jnp.bfloat16)   # (Hp, Fp)
    b0 = pad_cols(params["b0"], Fp).astype(jnp.float32)                  # (1, Fp)
    w1 = pad_rows(pad_cols(params["w1"], Hp), Fp).astype(jnp.bfloat16)   # (Fp, Hp)
    b1 = pad_cols(params["b1"], Hp).astype(jnp.float32)                  # (1, Hp)

    # Generation-aware VMEM budget (v7x has 64 MiB, v5e/v6e 128 MiB).
    try:
        cap = getattr(pltpu.get_tpu_info(), "vmem_capacity_bytes", 64 << 20)
    except Exception:
        cap = 64 << 20
    vmem_limit = int(min(cap * 3 // 4, 100 << 20))

    if bt is None:
        bt = _pick_batch_tile(B, S, D, Hp, Fp, vmem_limit)
    assert B % bt == 0, (B, bt)

    def call(single_buffer_weights):
        def const_spec(shape):
            idx = lambda b: (0,) * len(shape)
            if single_buffer_weights:
                try:
                    # Constant-index weights: no need for double buffering.
                    return pl.BlockSpec(shape, idx, pipeline_mode=pl.Buffered(1))
                except TypeError:
                    pass
            return pl.BlockSpec(shape, idx)

        return pl.pallas_call(
            functools.partial(attention_kernel, h_real=H),
            out_shape=jax.ShapeDtypeStruct((B, S, Hp), jnp.float32),
            grid_spec=pltpu.PrefetchScalarGridSpec(
                num_scalar_prefetch=0,
                grid=(B // bt,),
                in_specs=[
                    pl.BlockSpec((bt, S, D), lambda b: (b, 0, 0)),   # x batch tile
                    const_spec((D, 3 * Hp)), const_spec((1, 3 * Hp)),  # fused qkv
                    const_spec((Hp, Fp)),    const_spec((1, Fp)),      # ff_layer_0
                    const_spec((Fp, Hp)),    const_spec((1, Hp)),      # ff_layer_1
                ],
                out_specs=pl.BlockSpec((bt, S, Hp), lambda b: (b, 0, 0)),
            ),
            compiler_params=pltpu.CompilerParams(
                dimension_semantics=("parallel",),   # batch tiles → megacore on v7x
                vmem_limit_bytes=vmem_limit,
            ),
        )(x, wqkv, bqkv, w0, b0, w1, b1)

    try:
        out = call(True)
    except Exception:
        # pl.Buffered(1) not supported on this JAX version → default buffering.
        out = call(False)

    return out[..., :H] if Hp != H else out


def init_params(key, input_dim, hidden_dim):
    ks = jax.random.split(key, 10)

    def lin(kw, kb, fan_in, fan_out):
        bound = 1.0 / (fan_in ** 0.5)
        # stored already transposed: (in, out), so y = x @ W + b
        w = jax.random.uniform(kw, (fan_in, fan_out), jnp.float32, -bound, bound)
        b = jax.random.uniform(kb, (1, fan_out), jnp.float32, -bound, bound)
        return w, b

    wq, bq = lin(ks[0], ks[1], input_dim, hidden_dim)
    wk, bk = lin(ks[2], ks[3], input_dim, hidden_dim)
    wv, bv = lin(ks[4], ks[5], input_dim, hidden_dim)
    w0, b0 = lin(ks[6], ks[7], hidden_dim, hidden_dim * 2)
    w1, b1 = lin(ks[8], ks[9], hidden_dim * 2, hidden_dim)
    return dict(wq=wq, bq=bq, wk=wk, bk=bk, wv=wv, bv=bv,
                w0=w0, b0=b0, w1=w1, b1=b1)


def reference(x, p):
    """Pure-JAX float32 reference matching the PyTorch module."""
    q = x @ p["wq"] + p["bq"]
    k = x @ p["wk"] + p["bk"]
    v = x @ p["wv"] + p["bv"]
    dotp = jnp.einsum("bqh,bkh->bqk", q, k) / (q.shape[-1] ** 0.5)
    attn = jax.nn.softmax(dotp, axis=-1)
    h = jnp.einsum("bqk,bkh->bqh", attn, v) + q

    def ln(t):
        mean = jnp.mean(t, axis=(1, 2), keepdims=True)
        var = jnp.mean((t - mean) ** 2, axis=(1, 2), keepdims=True)
        return (t - mean) * lax.rsqrt(var + 1e-5)

    h = ln(h)
    d0 = jax.nn.relu(h @ p["w0"] + p["b0"])
    h = h + d0 @ p["w1"] + p["b1"]
    return ln(h)


if __name__ == "__main__":
    input_dim = 2
    hidden_dim = 64
    B, S = 2, 8

    key = jax.random.PRNGKey(0)
    kx, kp = jax.random.split(key)
    x = jax.random.normal(kx, (B, S, input_dim), jnp.float32)
    params = init_params(kp, input_dim, hidden_dim)

    out = attention_layer(x, params)
    out = jax.block_until_ready(out)

    ref = reference(x, params)
    assert out.shape == (B, S, hidden_dim), out.shape
    # bf16 matmul inputs (f32 accumulation) → loosened tolerance vs f32 reference
    max_err = float(jnp.max(jnp.abs(out - ref)))
    assert jnp.allclose(out, ref, atol=5e-2, rtol=5e-2), max_err

    print("KERNEL_OK")
</pallas_src>

<mosaic_0001>
module attributes {stable_mosaic.version = 11 : i64} {
  func.func @attention_kernel(%arg0: i32, %arg1: memref<1x8x2xf32, #tpu.memory_space<vmem>>, %arg2: memref<2x384xbf16, #tpu.memory_space<vmem>>, %arg3: memref<1x384xf32, #tpu.memory_space<vmem>>, %arg4: memref<128x128xbf16, #tpu.memory_space<vmem>>, %arg5: memref<1x128xf32, #tpu.memory_space<vmem>>, %arg6: memref<128x128xbf16, #tpu.memory_space<vmem>>, %arg7: memref<1x128xf32, #tpu.memory_space<vmem>>, %arg8: memref<1x8x128xf32, #tpu.memory_space<vmem>>) attributes {dimension_semantics = [#tpu.dimension_semantics<parallel>], iteration_bounds = array<i64: 2>, scalar_prefetch = 0 : i64, scratch_operands = 0 : i64, tpu.core_type = #tpu.core_type<tc>, window_params = [{transform_indices = @transform_0, window_bounds = array<i64: 1, 8, 2>}, {pipeline_mode = #tpu.pipeline_mode<synchronous>, transform_indices = @transform_1, window_bounds = array<i64: 2, 384>}, {pipeline_mode = #tpu.pipeline_mode<synchronous>, transform_indices = @transform_2, window_bounds = array<i64: 1, 384>}, {pipeline_mode = #tpu.pipeline_mode<synchronous>, transform_indices = @transform_3, window_bounds = array<i64: 128, 128>}, {pipeline_mode = #tpu.pipeline_mode<synchronous>, transform_indices = @transform_4, window_bounds = array<i64: 1, 128>}, {pipeline_mode = #tpu.pipeline_mode<synchronous>, transform_indices = @transform_5, window_bounds = array<i64: 128, 128>}, {pipeline_mode = #tpu.pipeline_mode<synchronous>, transform_indices = @transform_6, window_bounds = array<i64: 1, 128>}, {transform_indices = @transform_7, window_bounds = array<i64: 1, 8, 128>}]} {
    %0 = tpu.iota {dimensions = array<i32: 2>} : vector<1x1x128xi32>
    %c64_i32 = arith.constant 64 : i32
    %1 = vector.broadcast %c64_i32 : i32 to vector<1x1x128xi32>
    %2 = arith.cmpi slt, %0, %1 : vector<1x1x128xi32>
    %3 = arith.extui %2 : vector<1x1x128xi1> to vector<1x1x128xi32>
    %4 = arith.sitofp %3 : vector<1x1x128xi32> to vector<1x1x128xf32>
    %c0 = arith.constant 0 : index
    %c0_0 = arith.constant 0 : index
    %c0_1 = arith.constant 0 : index
    %5 = vector.load %arg1[%c0, %c0_0, %c0_1] : memref<1x8x2xf32, #tpu.memory_space<vmem>>, vector<1x8x2xf32>
    %6 = arith.truncf %5 : vector<1x8x2xf32> to vector<1x8x2xbf16>
    %7 = vector.shape_cast %6 : vector<1x8x2xbf16> to vector<8x2xbf16>
    %c0_2 = arith.constant 0 : index
    %c0_3 = arith.constant 0 : index
    %8 = vector.load %arg2[%c0_2, %c0_3] : memref<2x384xbf16, #tpu.memory_space<vmem>>, vector<2x384xbf16>
    %cst = arith.constant dense<0.000000e+00> : vector<8x384xf32>
    %9 = tpu.matmul %7, %8, %cst {dimension_numbers = #tpu.dot_dimension_numbers<[1], [0], [0], [1], [0, 0, 1, 1], [], []>} : vector<8x2xbf16>, vector<2x384xbf16>, vector<8x384xf32> -> vector<8x384xf32>
    %c0_4 = arith.constant 0 : index
    %c0_5 = arith.constant 0 : index
    %10 = vector.load %arg3[%c0_4, %c0_5] : memref<1x384xf32, #tpu.memory_space<vmem>>, vector<1x384xf32>
    %11 = vector.broadcast %10 : vector<1x384xf32> to vector<8x384xf32>
    %12 = arith.addf %9, %11 : vector<8x384xf32>
    %13 = vector.shape_cast %12 : vector<8x384xf32> to vector<1x8x384xf32>
    %14 = vector.extract_strided_slice %13 {offsets = [0, 0, 0], sizes = [1, 8, 128], strides = [1, 1, 1]} : vector<1x8x384xf32> to vector<1x8x128xf32>
    %15 = vector.extract_strided_slice %13 {offsets = [0, 0, 128], sizes = [1, 8, 128], strides = [1, 1, 1]} : vector<1x8x384xf32> to vector<1x8x128xf32>
    %16 = vector.extract_strided_slice %13 {offsets = [0, 0, 256], sizes = [1, 8, 128], strides = [1, 1, 1]} : vector<1x8x384xf32> to vector<1x8x128xf32>
    %17 = arith.truncf %14 : vector<1x8x128xf32> to vector<1x8x128xbf16>
    %18 = arith.truncf %15 : vector<1x8x128xf32> to vector<1x8x128xbf16>
    %cst_6 = arith.constant dense<0.000000e+00> : vector<1x8x8xf32>
    %19 = tpu.matmul %17, %18, %cst_6 {dimension_numbers = #tpu.dot_dimension_numbers<[2], [2], [1], [1], [0, 0, 0, 1, 1, 1], [0], [0]>} : vector<1x8x128xbf16>, vector<1x8x128xbf16>, vector<1x8x8xf32> -> vector<1x8x8xf32>
    %cst_7 = arith.constant dense<0xFF800000> : vector<1x8xf32>
    %20 = vector.multi_reduction <maximumf>, %19, %cst_7 [2] : vector<1x8x8xf32> to vector<1x8xf32>
    %21 = vector.shape_cast %20 : vector<1x8xf32> to vector<1x8x1xf32>
    %22 = vector.broadcast %21 : vector<1x8x1xf32> to vector<1x8x8xf32>
    %23 = arith.subf %19, %22 : vector<1x8x8xf32>
    %24 = math.exp %23 : vector<1x8x8xf32>
    %cst_8 = arith.constant dense<0.000000e+00> : vector<1x8xf32>
    %25 = vector.multi_reduction <add>, %24, %cst_8 [2] : vector<1x8x8xf32> to vector<1x8xf32>
    %26 = vector.shape_cast %25 : vector<1x8xf32> to vector<1x8x1xf32>
    %27 = arith.truncf %24 : vector<1x8x8xf32> to vector<1x8x8xbf16>
    %28 = arith.truncf %16 : vector<1x8x128xf32> to vector<1x8x128xbf16>
    %cst_9 = arith.constant dense<0.000000e+00> : vector<1x8x128xf32>
    %29 = tpu.matmul %27, %28, %cst_9 {dimension_numbers = #tpu.dot_dimension_numbers<[2], [1], [1], [2], [0, 0, 0, 1, 1, 2], [0], [0]>} : vector<1x8x8xbf16>, vector<1x8x128xbf16>, vector<1x8x128xf32> -> vector<1x8x128xf32>
    %cst_10 = arith.constant 1.000000e+00 : f32
    %30 = vector.broadcast %cst_10 : f32 to vector<1x8x1xf32>
    %31 = arith.divf %30, %26 : vector<1x8x1xf32>
    %32 = vector.broadcast %31 : vector<1x8x1xf32> to vector<1x8x128xf32>
    %33 = arith.mulf %29, %32 : vector<1x8x128xf32>
    %34 = arith.addf %33, %14 : vector<1x8x128xf32>
    %cst_11 = arith.constant dense<0.000000e+00> : vector<1xf32>
    %35 = vector.multi_reduction <add>, %34, %cst_11 [1, 2] : vector<1x8x128xf32> to vector<1xf32>
    %36 = vector.shape_cast %35 : vector<1xf32> to vector<1x1x1xf32>
    %37 = arith.mulf %34, %34 : vector<1x8x128xf32>
    %cst_12 = arith.constant dense<0.000000e+00> : vector<1xf32>
    %38 = vector.multi_reduction <add>, %37, %cst_12 [1, 2] : vector<1x8x128xf32> to vector<1xf32>
    %39 = vector.shape_cast %38 : vector<1xf32> to vector<1x1x1xf32>
    %cst_13 = arith.constant 5.120000e+02 : f32
    %40 = vector.broadcast %cst_13 : f32 to vector<1x1x1xf32>
    %41 = arith.divf %36, %40 : vector<1x1x1xf32>
    %cst_14 = arith.constant 5.120000e+02 : f32
    %42 = vector.broadcast %cst_14 : f32 to vector<1x1x1xf32>
    %43 = arith.divf %39, %42 : vector<1x1x1xf32>
    %44 = arith.mulf %41, %41 : vector<1x1x1xf32>
    %45 = arith.subf %43, %44 : vector<1x1x1xf32>
    %cst_15 = arith.constant 0.000000e+00 : f32
    %46 = vector.broadcast %cst_15 : f32 to vector<1x1x1xf32>
    %47 = arith.maximumf %45, %46 : vector<1x1x1xf32>
    %48 = vector.broadcast %41 : vector<1x1x1xf32> to vector<1x8x128xf32>
    %49 = arith.subf %34, %48 : vector<1x8x128xf32>
    %cst_16 = arith.constant 9.99999974E-6 : f32
    %50 = vector.broadcast %cst_16 : f32 to vector<1x1x1xf32>
    %51 = arith.addf %47, %50 : vector<1x1x1xf32>
    %52 = math.rsqrt %51 : vector<1x1x1xf32>
    %53 = vector.broadcast %52 : vector<1x1x1xf32> to vector<1x8x128xf32>
    %54 = arith.mulf %49, %53 : vector<1x8x128xf32>
    %55 = vector.broadcast %4 : vector<1x1x128xf32> to vector<1x8x128xf32>
    %56 = arith.mulf %54, %55 : vector<1x8x128xf32>
    %57 = arith.truncf %56 : vector<1x8x128xf32> to vector<1x8x128xbf16>
    %58 = vector.shape_cast %57 : vector<1x8x128xbf16> to vector<8x128xbf16>
    %c0_17 = arith.constant 0 : index
    %c0_18 = arith.constant 0 : index
    %59 = vector.load %arg4[%c0_17, %c0_18] : memref<128x128xbf16, #tpu.memory_space<vmem>>, vector<128x128xbf16>
    %cst_19 = arith.constant dense<0.000000e+00> : vector<8x128xf32>
    %60 = tpu.matmul %58, %59, %cst_19 {dimension_numbers = #tpu.dot_dimension_numbers<[1], [0], [0], [1], [0, 0, 1, 1], [], []>} : vector<8x128xbf16>, vector<128x128xbf16>, vector<8x128xf32> -> vector<8x128xf32>
    %c0_20 = arith.constant 0 : index
    %c0_21 = arith.constant 0 : index
    %61 = vector.load %arg5[%c0_20, %c0_21] : memref<1x128xf32, #tpu.memory_space<vmem>>, vector<1x128xf32>
    %62 = vector.broadcast %61 : vector<1x128xf32> to vector<8x128xf32>
    %63 = arith.addf %60, %62 : vector<8x128xf32>
    %cst_22 = arith.constant 0.000000e+00 : f32
    %64 = vector.broadcast %cst_22 : f32 to vector<8x128xf32>
    %65 = arith.maximumf %63, %64 : vector<8x128xf32>
    %66 = arith.truncf %65 : vector<8x128xf32> to vector<8x128xbf16>
    %c0_23 = arith.constant 0 : index
    %c0_24 = arith.constant 0 : index
    %67 = vector.load %arg6[%c0_23, %c0_24] : memref<128x128xbf16, #tpu.memory_space<vmem>>, vector<128x128xbf16>
    %cst_25 = arith.constant dense<0.000000e+00> : vector<8x128xf32>
    %68 = tpu.matmul %66, %67, %cst_25 {dimension_numbers = #tpu.dot_dimension_numbers<[1], [0], [0], [1], [0, 0, 1, 1], [], []>} : vector<8x128xbf16>, vector<128x128xbf16>, vector<8x128xf32> -> vector<8x128xf32>
    %c0_26 = arith.constant 0 : index
    %c0_27 = arith.constant 0 : index
    %69 = vector.load %arg7[%c0_26, %c0_27] : memref<1x128xf32, #tpu.memory_space<vmem>>, vector<1x128xf32>
    %70 = vector.broadcast %69 : vector<1x128xf32> to vector<8x128xf32>
    %71 = arith.addf %68, %70 : vector<8x128xf32>
    %72 = vector.shape_cast %71 : vector<8x128xf32> to vector<1x8x128xf32>
    %73 = arith.addf %56, %72 : vector<1x8x128xf32>
    %cst_28 = arith.constant dense<0.000000e+00> : vector<1xf32>
    %74 = vector.multi_reduction <add>, %73, %cst_28 [1, 2] : vector<1x8x128xf32> to vector<1xf32>
    %75 = vector.shape_cast %74 : vector<1xf32> to vector<1x1x1xf32>
    %76 = arith.mulf %73, %73 : vector<1x8x128xf32>
    %cst_29 = arith.constant dense<0.000000e+00> : vector<1xf32>
    %77 = vector.multi_reduction <add>, %76, %cst_29 [1, 2] : vector<1x8x128xf32> to vector<1xf32>
    %78 = vector.shape_cast %77 : vector<1xf32> to vector<1x1x1xf32>
    %cst_30 = arith.constant 5.120000e+02 : f32
    %79 = vector.broadcast %cst_30 : f32 to vector<1x1x1xf32>
    %80 = arith.divf %75, %79 : vector<1x1x1xf32>
    %cst_31 = arith.constant 5.120000e+02 : f32
    %81 = vector.broadcast %cst_31 : f32 to vector<1x1x1xf32>
    %82 = arith.divf %78, %81 : vector<1x1x1xf32>
    %83 = arith.mulf %80, %80 : vector<1x1x1xf32>
    %84 = arith.subf %82, %83 : vector<1x1x1xf32>
    %cst_32 = arith.constant 0.000000e+00 : f32
    %85 = vector.broadcast %cst_32 : f32 to vector<1x1x1xf32>
    %86 = arith.maximumf %84, %85 : vector<1x1x1xf32>
    %87 = vector.broadcast %80 : vector<1x1x1xf32> to vector<1x8x128xf32>
    %88 = arith.subf %73, %87 : vector<1x8x128xf32>
    %cst_33 = arith.constant 9.99999974E-6 : f32
    %89 = vector.broadcast %cst_33 : f32 to vector<1x1x1xf32>
    %90 = arith.addf %86, %89 : vector<1x1x1xf32>
    %91 = math.rsqrt %90 : vector<1x1x1xf32>
    %92 = vector.broadcast %91 : vector<1x1x1xf32> to vector<1x8x128xf32>
    %93 = arith.mulf %88, %92 : vector<1x8x128xf32>
    %94 = vector.broadcast %4 : vector<1x1x128xf32> to vector<1x8x128xf32>
    %95 = arith.mulf %93, %94 : vector<1x8x128xf32>
    %c0_34 = arith.constant 0 : index
    %c0_35 = arith.constant 0 : index
    %c0_36 = arith.constant 0 : index
    %96 = vector.load %arg8[%c0_34, %c0_35, %c0_36] : memref<1x8x128xf32, #tpu.memory_space<vmem>>, vector<1x8x128xf32>
    tpu.vector_store %arg8[%c0_34, %c0_35, %c0_36], %95 {strides = array<i32>} : memref<1x8x128xf32, #tpu.memory_space<vmem>>, vector<1x8x128xf32>,
    return
  }
  func.func @transform_0(%arg0: i32) -> (i32, i32, i32) {
    %c0_i32 = arith.constant 0 : i32
    %c0_i32_0 = arith.constant 0 : i32
    %c0_i32_1 = arith.constant 0 : i32
    return %arg0, %c0_i32, %c0_i32_0 : i32, i32, i32
  }
  func.func @transform_1(%arg0: i32) -> (i32, i32) {
    %c0_i32 = arith.constant 0 : i32
    %c0_i32_0 = arith.constant 0 : i32
    %c0_i32_1 = arith.constant 0 : i32
    return %c0_i32, %c0_i32_0 : i32, i32
  }
  func.func @transform_2(%arg0: i32) -> (i32, i32) {
    %c0_i32 = arith.constant 0 : i32
    %c0_i32_0 = arith.constant 0 : i32
    %c0_i32_1 = arith.constant 0 : i32
    return %c0_i32, %c0_i32_0 : i32, i32
  }
  func.func @transform_3(%arg0: i32) -> (i32, i32) {
    %c0_i32 = arith.constant 0 : i32
    %c0_i32_0 = arith.constant 0 : i32
    %c0_i32_1 = arith.constant 0 : i32
    return %c0_i32, %c0_i32_0 : i32, i32
  }
  func.func @transform_4(%arg0: i32) -> (i32, i32) {
    %c0_i32 = arith.constant 0 : i32
    %c0_i32_0 = arith.constant 0 : i32
    %c0_i32_1 = arith.constant 0 : i32
    return %c0_i32, %c0_i32_0 : i32, i32
  }
  func.func @transform_5(%arg0: i32) -> (i32, i32) {
    %c0_i32 = arith.constant 0 : i32
    %c0_i32_0 = arith.constant 0 : i32
    %c0_i32_1 = arith.constant 0 : i32
    return %c0_i32, %c0_i32_0 : i32, i32
  }
  func.func @transform_6(%arg0: i32) -> (i32, i32) {
    %c0_i32 = arith.constant 0 : i32
    %c0_i32_0 = arith.constant 0 : i32
    %c0_i32_1 = arith.constant 0 : i32
    return %c0_i32, %c0_i32_0 : i32, i32
  }
  func.func @transform_7(%arg0: i32) -> (i32, i32, i32) {
    %c0_i32 = arith.constant 0 : i32
    %c0_i32_0 = arith.constant 0 : i32
    %c0_i32_1 = arith.constant 0 : i32
    return %arg0, %c0_i32, %c0_i32_0 : i32, i32, i32
  }
}

module attributes {stable_mosaic.version = 11 : i64} {
  func.func @attention_kernel(%arg0: i32, %arg1: memref<1x8x2xf32, #tpu.memory_space<vmem>>, %arg2: memref<2x384xbf16, #tpu.memory_space<vmem>>, %arg3: memref<1x384xf32, #tpu.memory_space<vmem>>, %arg4: memref<128x128xbf16, #tpu.memory_space<vmem>>, %arg5: memref<1x128xf32, #tpu.memory_space<vmem>>, %arg6: memref<128x128xbf16, #tpu.memory_space<vmem>>, %arg7: memref<1x128xf32, #tpu.memory_space<vmem>>, %arg8: memref<1x8x128xf32, #tpu.memory_space<vmem>>) attributes {dimension_semantics = [#tpu.dimension_semantics<parallel>], iteration_bounds = array<i64: 2>, scalar_prefetch = 0 : i64, scratch_operands = 0 : i64, tpu.core_type = #tpu.core_type<tc>, window_params = [{transform_indices = @transform_0, window_bounds = array<i64: 1, 8, 2>}, {pipeline_mode = #tpu.pipeline_mode<synchronous>, transform_indices = @transform_1, window_bounds = array<i64: 2, 384>}, {pipeline_mode = #tpu.pipeline_mode<synchronous>, transform_indices = @transform_2, window_bounds = array<i64: 1, 384>}, {pipeline_mode = #tpu.pipeline_mode<synchronous>, transform_indices = @transform_3, window_bounds = array<i64: 128, 128>}, {pipeline_mode = #tpu.pipeline_mode<synchronous>, transform_indices = @transform_4, window_bounds = array<i64: 1, 128>}, {pipeline_mode = #tpu.pipeline_mode<synchronous>, transform_indices = @transform_5, window_bounds = array<i64: 128, 128>}, {pipeline_mode = #tpu.pipeline_mode<synchronous>, transform_indices = @transform_6, window_bounds = array<i64: 1, 128>}, {transform_indices = @transform_7, window_bounds = array<i64: 1, 8, 128>}]} {
    %0 = tpu.iota {dimensions = array<i32: 2>} : vector<1x1x128xi32>
    %c64_i32 = arith.constant 64 : i32
    %1 = vector.broadcast %c64_i32 : i32 to vector<1x1x128xi32>
    %2 = arith.cmpi slt, %0, %1 : vector<1x1x128xi32>
    %3 = arith.extui %2 : vector<1x1x128xi1> to vector<1x1x128xi32>
    %4 = arith.sitofp %3 : vector<1x1x128xi32> to vector<1x1x128xf32>
    %c0 = arith.constant 0 : index
    %c0_0 = arith.constant 0 : index
    %c0_1 = arith.constant 0 : index
    %5 = vector.load %arg1[%c0, %c0_0, %c0_1] : memref<1x8x2xf32, #tpu.memory_space<vmem>>, vector<1x8x2xf32>
    %6 = arith.truncf %5 : vector<1x8x2xf32> to vector<1x8x2xbf16>
    %7 = vector.shape_cast %6 : vector<1x8x2xbf16> to vector<8x2xbf16>
    %c0_2 = arith.constant 0 : index
    %c0_3 = arith.constant 0 : index
    %8 = vector.load %arg2[%c0_2, %c0_3] : memref<2x384xbf16, #tpu.memory_space<vmem>>, vector<2x384xbf16>
    %cst = arith.constant dense<0.000000e+00> : vector<8x384xf32>
    %9 = tpu.matmul %7, %8, %cst {dimension_numbers = #tpu.dot_dimension_numbers<[1], [0], [0], [1], [0, 0, 1, 1], [], []>} : vector<8x2xbf16>, vector<2x384xbf16>, vector<8x384xf32> -> vector<8x384xf32>
    %c0_4 = arith.constant 0 : index
    %c0_5 = arith.constant 0 : index
    %10 = vector.load %arg3[%c0_4, %c0_5] : memref<1x384xf32, #tpu.memory_space<vmem>>, vector<1x384xf32>
    %11 = vector.broadcast %10 : vector<1x384xf32> to vector<8x384xf32>
    %12 = arith.addf %9, %11 : vector<8x384xf32>
    %13 = vector.shape_cast %12 : vector<8x384xf32> to vector<1x8x384xf32>
    %14 = vector.extract_strided_slice %13 {offsets = [0, 0, 0], sizes = [1, 8, 128], strides = [1, 1, 1]} : vector<1x8x384xf32> to vector<1x8x128xf32>
    %15 = vector.extract_strided_slice %13 {offsets = [0, 0, 128], sizes = [1, 8, 128], strides = [1, 1, 1]} : vector<1x8x384xf32> to vector<1x8x128xf32>
    %16 = vector.extract_strided_slice %13 {offsets = [0, 0, 256], sizes = [1, 8, 128], strides = [1, 1, 1]} : vector<1x8x384xf32> to vector<1x8x128xf32>
    %17 = arith.truncf %14 : vector<1x8x128xf32> to vector<1x8x128xbf16>
    %18 = arith.truncf %15 : vector<1x8x128xf32> to vector<1x8x128xbf16>
    %cst_6 = arith.constant dense<0.000000e+00> : vector<1x8x8xf32>
    %19 = tpu.matmul %17, %18, %cst_6 {dimension_numbers = #tpu.dot_dimension_numbers<[2], [2], [1], [1], [0, 0, 0, 1, 1, 1], [0], [0]>} : vector<1x8x128xbf16>, vector<1x8x128xbf16>, vector<1x8x8xf32> -> vector<1x8x8xf32>
    %cst_7 = arith.constant dense<0xFF800000> : vector<1x8xf32>
    %20 = vector.multi_reduction <maximumf>, %19, %cst_7 [2] : vector<1x8x8xf32> to vector<1x8xf32>
    %21 = vector.shape_cast %20 : vector<1x8xf32> to vector<1x8x1xf32>
    %22 = vector.broadcast %21 : vector<1x8x1xf32> to vector<1x8x8xf32>
    %23 = arith.subf %19, %22 : vector<1x8x8xf32>
    %24 = math.exp %23 : vector<1x8x8xf32>
    %cst_8 = arith.constant dense<0.000000e+00> : vector<1x8xf32>
    %25 = vector.multi_reduction <add>, %24, %cst_8 [2] : vector<1x8x8xf32> to vector<1x8xf32>
    %26 = vector.shape_cast %25 : vector<1x8xf32> to vector<1x8x1xf32>
    %27 = arith.truncf %24 : vector<1x8x8xf32> to vector<1x8x8xbf16>
    %28 = arith.truncf %16 : vector<1x8x128xf32> to vector<1x8x128xbf16>
    %cst_9 = arith.constant dense<0.000000e+00> : vector<1x8x128xf32>
    %29 = tpu.matmul %27, %28, %cst_9 {dimension_numbers = #tpu.dot_dimension_numbers<[2], [1], [1], [2], [0, 0, 0, 1, 1, 2], [0], [0]>} : vector<1x8x8xbf16>, vector<1x8x128xbf16>, vector<1x8x128xf32> -> vector<1x8x128xf32>
    %cst_10 = arith.constant 1.000000e+00 : f32
    %30 = vector.broadcast %cst_10 : f32 to vector<1x8x1xf32>
    %31 = arith.divf %30, %26 : vector<1x8x1xf32>
    %32 = vector.broadcast %31 : vector<1x8x1xf32> to vector<1x8x128xf32>
    %33 = arith.mulf %29, %32 : vector<1x8x128xf32>
    %34 = arith.addf %33, %14 : vector<1x8x128xf32>
    %cst_11 = arith.constant dense<0.000000e+00> : vector<1xf32>
    %35 = vector.multi_reduction <add>, %34, %cst_11 [1, 2] : vector<1x8x128xf32> to vector<1xf32>
    %36 = vector.shape_cast %35 : vector<1xf32> to vector<1x1x1xf32>
    %37 = arith.mulf %34, %34 : vector<1x8x128xf32>
    %cst_12 = arith.constant dense<0.000000e+00> : vector<1xf32>
    %38 = vector.multi_reduction <add>, %37, %cst_12 [1, 2] : vector<1x8x128xf32> to vector<1xf32>
    %39 = vector.shape_cast %38 : vector<1xf32> to vector<1x1x1xf32>
    %cst_13 = arith.constant 5.120000e+02 : f32
    %40 = vector.broadcast %cst_13 : f32 to vector<1x1x1xf32>
    %41 = arith.divf %36, %40 : vector<1x1x1xf32>
    %cst_14 = arith.constant 5.120000e+02 : f32
    %42 = vector.broadcast %cst_14 : f32 to vector<1x1x1xf32>
    %43 = arith.divf %39, %42 : vector<1x1x1xf32>
    %44 = arith.mulf %41, %41 : vector<1x1x1xf32>
    %45 = arith.subf %43, %44 : vector<1x1x1xf32>
    %cst_15 = arith.constant 0.000000e+00 : f32
    %46 = vector.broadcast %cst_15 : f32 to vector<1x1x1xf32>
    %47 = arith.maximumf %45, %46 : vector<1x1x1xf32>
    %48 = vector.broadcast %41 : vector<1x1x1xf32> to vector<1x8x128xf32>
    %49 = arith.subf %34, %48 : vector<1x8x128xf32>
    %cst_16 = arith.constant 9.99999974E-6 : f32
    %50 = vector.broadcast %cst_16 : f32 to vector<1x1x1xf32>
    %51 = arith.addf %47, %50 : vector<1x1x1xf32>
    %52 = math.rsqrt %51 : vector<1x1x1xf32>
    %53 = vector.broadcast %52 : vector<1x1x1xf32> to vector<1x8x128xf32>
    %54 = arith.mulf %49, %53 : vector<1x8x128xf32>
    %55 = vector.broadcast %4 : vector<1x1x128xf32> to vector<1x8x128xf32>
    %56 = arith.mulf %54, %55 : vector<1x8x128xf32>
    %57 = arith.truncf %56 : vector<1x8x128xf32> to vector<1x8x128xbf16>
    %58 = vector.shape_cast %57 : vector<1x8x128xbf16> to vector<8x128xbf16>
    %c0_17 = arith.constant 0 : index
    %c0_18 = arith.constant 0 : index
    %59 = vector.load %arg4[%c0_17, %c0_18] : memref<128x128xbf16, #tpu.memory_space<vmem>>, vector<128x128xbf16>
    %cst_19 = arith.constant dense<0.000000e+00> : vector<8x128xf32>
    %60 = tpu.matmul %58, %59, %cst_19 {dimension_numbers = #tpu.dot_dimension_numbers<[1], [0], [0], [1], [0, 0, 1, 1], [], []>} : vector<8x128xbf16>, vector<128x128xbf16>, vector<8x128xf32> -> vector<8x128xf32>
    %c0_20 = arith.constant 0 : index
    %c0_21 = arith.constant 0 : index
    %61 = vector.load %arg5[%c0_20, %c0_21] : memref<1x128xf32, #tpu.memory_space<vmem>>, vector<1x128xf32>
    %62 = vector.broadcast %61 : vector<1x128xf32> to vector<8x128xf32>
    %63 = arith.addf %60, %62 : vector<8x128xf32>
    %cst_22 = arith.constant 0.000000e+00 : f32
    %64 = vector.broadcast %cst_22 : f32 to vector<8x128xf32>
    %65 = arith.maximumf %63, %64 : vector<8x128xf32>
    %66 = arith.truncf %65 : vector<8x128xf32> to vector<8x128xbf16>
    %c0_23 = arith.constant 0 : index
    %c0_24 = arith.constant 0 : index
    %67 = vector.load %arg6[%c0_23, %c0_24] : memref<128x128xbf16, #tpu.memory_space<vmem>>, vector<128x128xbf16>
    %cst_25 = arith.constant dense<0.000000e+00> : vector<8x128xf32>
    %68 = tpu.matmul %66, %67, %cst_25 {dimension_numbers = #tpu.dot_dimension_numbers<[1], [0], [0], [1], [0, 0, 1, 1], [], []>} : vector<8x128xbf16>, vector<128x128xbf16>, vector<8x128xf32> -> vector<8x128xf32>
    %c0_26 = arith.constant 0 : index
    %c0_27 = arith.constant 0 : index
    %69 = vector.load %arg7[%c0_26, %c0_27] : memref<1x128xf32, #tpu.memory_space<vmem>>, vector<1x128xf32>
    %70 = vector.broadcast %69 : vector<1x128xf32> to vector<8x128xf32>
    %71 = arith.addf %68, %70 : vector<8x128xf32>
    %72 = vector.shape_cast %71 : vector<8x128xf32> to vector<1x8x128xf32>
    %73 = arith.addf %56, %72 : vector<1x8x128xf32>
    %cst_28 = arith.constant dense<0.000000e+00> : vector<1xf32>
    %74 = vector.multi_reduction <add>, %73, %cst_28 [1, 2] : vector<1x8x128xf32> to vector<1xf32>
    %75 = vector.shape_cast %74 : vector<1xf32> to vector<1x1x1xf32>
    %76 = arith.mulf %73, %73 : vector<1x8x128xf32>
    %cst_29 = arith.constant dense<0.000000e+00> : vector<1xf32>
    %77 = vector.multi_reduction <add>, %76, %cst_29 [1, 2] : vector<1x8x128xf32> to vector<1xf32>
    %78 = vector.shape_cast %77 : vector<1xf32> to vector<1x1x1xf32>
    %cst_30 = arith.constant 5.120000e+02 : f32
    %79 = vector.broadcast %cst_30 : f32 to vector<1x1x1xf32>
    %80 = arith.divf %75, %79 : vector<1x1x1xf32>
    %cst_31 = arith.constant 5.120000e+02 : f32
    %81 = vector.broadcast %cst_31 : f32 to vector<1x1x1xf32>
    %82 = arith.divf %78, %81 : vector<1x1x1xf32>
    %83 = arith.mulf %80, %80 : vector<1x1x1xf32>
    %84 = arith.subf %82, %83 : vector<1x1x1xf32>
    %cst_32 = arith.constant 0.000000e+00 : f32
    %85 = vector.broadcast %cst_32 : f32 to vector<1x1x1xf32>
    %86 = arith.maximumf %84, %85 : vector<1x1x1xf32>
    %87 = vector.broadcast %80 : vector<1x1x1xf32> to vector<1x8x128xf32>
    %88 = arith.subf %73, %87 : vector<1x8x128xf32>
    %cst_33 = arith.constant 9.99999974E-6 : f32
    %89 = vector.broadcast %cst_33 : f32 to vector<1x1x1xf32>
    %90 = arith.addf %86, %89 : vector<1x1x1xf32>
    %91 = math.rsqrt %90 : vector<1x1x1xf32>
    %92 = vector.broadcast %91 : vector<1x1x1xf32> to vector<1x8x128xf32>
    %93 = arith.mulf %88, %92 : vector<1x8x128xf32>
    %94 = vector.broadcast %4 : vector<1x1x128xf32> to vector<1x8x128xf32>
    %95 = arith.mulf %93, %94 : vector<1x8x128xf32>
    %c0_34 = arith.constant 0 : index
    %c0_35 = arith.constant 0 : index
    %c0_36 = arith.constant 0 : index
    %96 = vector.load %arg8[%c0_34, %c0_35, %c0_36] : memref<1x8x128xf32, #tpu.memory_space<vmem>>, vector<1x8x128xf32>
    tpu.vector_store %arg8[%c0_34, %c0_35, %c0_36], %95 {strides = array<i32>} : memref<1x8x128xf32, #tpu.memory_space<vmem>>, vector<1x8x128xf32>,
    return
  }
  func.func @transform_0(%arg0: i32) -> (i32, i32, i32) {
    %c0_i32 = arith.constant 0 : i32
    %c0_i32_0 = arith.constant 0 : i32
    %c0_i32_1 = arith.constant 0 : i32
    return %arg0, %c0_i32, %c0_i32_0 : i32, i32, i32
  }
  func.func @transform_1(%arg0: i32) -> (i32, i32) {
    %c0_i32 = arith.constant 0 : i32
    %c0_i32_0 = arith.constant 0 : i32
    %c0_i32_1 = arith.constant 0 : i32
    return %c0_i32, %c0_i32_0 : i32, i32
  }
  func.func @transform_2(%arg0: i32) -> (i32, i32) {
    %c0_i32 = arith.constant 0 : i32
    %c0_i32_0 = arith.constant 0 : i32
    %c0_i32_1 = arith.constant 0 : i32
    return %c0_i32, %c0_i32_0 : i32, i32
  }
  func.func @transform_3(%arg0: i32) -> (i32, i32) {
    %c0_i32 = arith.constant 0 : i32
    %c0_i32_0 = arith.constant 0 : i32
    %c0_i32_1 = arith.constant 0 : i32
    return %c0_i32, %c0_i32_0 : i32, i32
  }
  func.func @transform_4(%arg0: i32) -> (i32, i32) {
    %c0_i32 = arith.constant 0 : i32
    %c0_i32_0 = arith.constant 0 : i32
    %c0_i32_1 = arith.constant 0 : i32
    return %c0_i32, %c0_i32_0 : i32, i32
  }
  func.func @transform_5(%arg0: i32) -> (i32, i32) {
    %c0_i32 = arith.constant 0 : i32
    %c0_i32_0 = arith.constant 0 : i32
    %c0_i32_1 = arith.constant 0 : i32
    return %c0_i32, %c0_i32_0 : i32, i32
  }
  func.func @transform_6(%arg0: i32) -> (i32, i32) {
    %c0_i32 = arith.constant 0 : i32
    %c0_i32_0 = arith.constant 0 : i32
    %c0_i32_1 = arith.constant 0 : i32
    return %c0_i32, %c0_i32_0 : i32, i32
  }
  func.func @transform_7(%arg0: i32) -> (i32, i32, i32) {
    %c0_i32 = arith.constant 0 : i32
    %c0_i32_0 = arith.constant 0 : i32
    %c0_i32_1 = arith.constant 0 : i32
    return %arg0, %c0_i32, %c0_i32_0 : i32, i32, i32
  }
}

</mosaic_0001>

<llo_original>
// kernel: tpu_custom_call.1
$region0: #{tpu_custom_call.1}
  #allocation0 [shape = 'u32[]', space=smem, size = 0x4, offset = 0x4, fixed_abs, tag = 'smem constant byte address 0x4 - core index']
  #allocation1 [shape = 'u32[144,128]{1,0:T(1,128)}', space=vmem, size = 0x12000, scoped, tag = 'internal scratch']
  %s0 = inlined_call_operand.vmem [shape: f32[2,8,2], index: 0, kind: input, shape index: {}]
  %s1 = inlined_call_operand.vmem [shape: bf16[2,384], index: 1, kind: input, shape index: {}]
  %s2 = inlined_call_operand.vmem [shape: f32[1,384], index: 2, kind: input, shape index: {}]
  %s3 = inlined_call_operand.hbm [shape: bf16[128,128], index: 3, kind: input, shape index: {}]
  %s4 = inlined_call_operand.vmem [shape: f32[1,128], index: 4, kind: input, shape index: {}]
  %s5 = inlined_call_operand.hbm [shape: bf16[128,128], index: 5, kind: input, shape index: {}]
  %s6 = inlined_call_operand.vmem [shape: f32[1,128], index: 6, kind: input, shape index: {}]
  %s7 = inlined_call_operand.hbm [shape: f32[2,8,128], index: 7, kind: output, shape index: {}]
  %s8 = sld [smem:[#allocation0]]
  $region69: #{tpu_custom_call.1} parent=0
    _
  %s10 = ssub.s32 1, %s8
  %s11 = scalar_select 0, %s10, %s8
  $region1: #{tpu_custom_call.1} parent=0
    #allocation2 [shape = 'u8[32768]{0}', space=vmem, size = 0x8000, scoped, tag = 'input window, operand 3, single buffered']
    #allocation3 [shape = 's32[2]{0}', space=sflag, size = 0x8, scoped, tag = 'scoped memory for tpu_custom_call.1']
    #allocation4 [shape = 's32[2]{0}', space=sflag, size = 0x8, scoped, tag = 'scoped memory for tpu_custom_call.1']
    #allocation5 [shape = 'u8[32768]{0}', space=vmem, size = 0x8000, scoped, tag = 'input window, operand 5, single buffered']
    #allocation6 [shape = 's32[1]{0}', space=sflag, size = 0x4, scoped, tag = 'scoped memory for tpu_custom_call.1']
    #allocation7 [shape = 'u8[8192]{0}', space=vmem, size = 0x2000, scoped, tag = 'output window, operand 0']
    %12 = vsyncpa [#allocation3], 0
    %13 = vsyncpa [#allocation6], 0
    %14 = vsyncpa [#allocation4], 0
    %s15 = scalar_lea.sflag [#allocation4], 1
    %16 = vsyncpa %s15, 0
    loop: start=0, step=1, limit=4
    $region2: #{tpu_custom_call.1} parent=1 // loop_pre_header
      _
    $region3: #{tpu_custom_call.1} parent=1 // loop_header
      %s18 = sphi 0, %s22
      %p19 = scmp.ge.s32.totalorder %s18, 4
      %s28 = sphi 0, %s30
      %s31 = sphi 0, %s28
      %s32 = sphi 0, %s31
      %s48 = sphi 0, %s32
      %s52 = sphi 0, %s52
      %s54 = sphi 0, %s52
      %s55 = sphi 0, %s54
      %s69 = sphi 0, %s55
      %s73 = sphi 0, %s73
      %s75 = sphi 0, %s73
      %s76 = sphi 0, %s75
      %s90 = sphi 0, %s76
      %s94 = sphi 0, %s94
      %s96 = sphi 0, %s94
      %s97 = sphi 0, %s96
      %s111 = sphi 0, %s97
      %s115 = sphi 0, %s115
      %s117 = sphi 0, %s115
      %s118 = sphi 0, %s117
      %s132 = sphi 0, %s118
      %s136 = sphi 0, %s136
      %s138 = sphi 0, %s136
      %s139 = sphi 0, %s138
      %s153 = sphi 0, %s139
      %s157 = sphi 0, %s157
      %s159 = sphi 0, %s157
      %s160 = sphi 0, %s159
      %s174 = sphi 0, %s160
      %s180 = sphi 0, %s182
      %s183 = sphi 0, %s180
      %s184 = sphi 0, %s183
      %s200 = sphi 0, %s184
    $region4: #{tpu_custom_call.1} parent=1 // loop_header_branch
      %21 = sbr.rel (%p19) target = $region8
    $region5: #{tpu_custom_call.1} parent=1 // loop_body
      %s23 = ssub.s32 %s18, 1
      %s24 = ssub.s32 %s18, 2
      %s25 = sadd.s32 %s18, 1
      %s26 = ssub.s32 %s18, %s25
      %p27 = scmp.eq.s32.totalorder %s26, 0
      %s29 = sadd.s32 %s28, 1
      %s30 = scalar_select %p27, %s28, %s29
      %p33 = pneg %p27
      %p34 = scmp.eq.s32.totalorder %s18, 1
      %p35 = por %p33, %p34
      %p36 = scmp.ne.s32.totalorder %s28, %s31
      %p37 = scmp.eq.s32.totalorder %s18, 0
      %p38 = por %p36, %p37
      %p39 = scmp.ne.s32.totalorder %s28, %s31
      %p40 = scmp.eq.s32.totalorder %s23, 1
      %p41 = por %p39, %p40
      %p42 = scmp.ne.s32.totalorder %s31, %s32
      %p43 = scmp.eq.s32.totalorder %s23, 0
      %p44 = por %p42, %p43
      %p45 = scmp.ne.s32.totalorder %s31, %s32
      %p46 = scmp.eq.s32.totalorder %s24, 1
      %p47 = por %p45, %p46
      %p49 = scmp.ne.s32.totalorder %s32, %s48
      %p50 = scmp.eq.s32.totalorder %s24, 0
      %p51 = por %p49, %p50
      %s53 = sadd.s32 %s52, 1
      %p56 = scmp.eq.s32.totalorder %s18, 1
      %p57 = scmp.ne.s32.totalorder %s52, %s54
      %p58 = scmp.eq.s32.totalorder %s18, 0
      %p59 = por %p57, %p58
      %p60 = scmp.ne.s32.totalorder %s52, %s54
      %p61 = scmp.eq.s32.totalorder %s23, 1
      %p62 = por %p60, %p61
      %p63 = scmp.ne.s32.totalorder %s54, %s55
      %p64 = scmp.eq.s32.totalorder %s23, 0
      %p65 = por %p63, %p64
      %p66 = scmp.ne.s32.totalorder %s54, %s55
      %p67 = scmp.eq.s32.totalorder %s24, 1
      %p68 = por %p66, %p67
      %p70 = scmp.ne.s32.totalorder %s55, %s69
      %p71 = scmp.eq.s32.totalorder %s24, 0
      %p72 = por %p70, %p71
      %s74 = sadd.s32 %s73, 1
      %p77 = scmp.eq.s32.totalorder %s18, 1
      %p78 = scmp.ne.s32.totalorder %s73, %s75
      %p79 = scmp.eq.s32.totalorder %s18, 0
      %p80 = por %p78, %p79
      %p81 = scmp.ne.s32.totalorder %s73, %s75
      %p82 = scmp.eq.s32.totalorder %s23, 1
      %p83 = por %p81, %p82
      %p84 = scmp.ne.s32.totalorder %s75, %s76
      %p85 = scmp.eq.s32.totalorder %s23, 0
      %p86 = por %p84, %p85
      %p87 = scmp.ne.s32.totalorder %s75, %s76
      %p88 = scmp.eq.s32.totalorder %s24, 1
      %p89 = por %p87, %p88
      %p91 = scmp.ne.s32.totalorder %s76, %s90
      %p92 = scmp.eq.s32.totalorder %s24, 0
      %p93 = por %p91, %p92
      %s95 = sadd.s32 %s94, 1
      %p98 = scmp.eq.s32.totalorder %s18, 1
      %p99 = scmp.ne.s32.totalorder %s94, %s96
      %p100 = scmp.eq.s32.totalorder %s18, 0
      %p101 = por %p99, %p100
      %p102 = scmp.ne.s32.totalorder %s94, %s96
      %p103 = scmp.eq.s32.totalorder %s23, 1
      %p104 = por %p102, %p103
      %p105 = scmp.ne.s32.totalorder %s96, %s97
      %p106 = scmp.eq.s32.totalorder %s23, 0
      %p107 = por %p105, %p106
      %p108 = scmp.ne.s32.totalorder %s96, %s97
      %p109 = scmp.eq.s32.totalorder %s24, 1
      %p110 = por %p108, %p109
      %p112 = scmp.ne.s32.totalorder %s97, %s111
      %p113 = scmp.eq.s32.totalorder %s24, 0
      %p114 = por %p112, %p113
      %s116 = sadd.s32 %s115, 1
      %p119 = scmp.eq.s32.totalorder %s18, 1
      %p120 = scmp.ne.s32.totalorder %s115, %s117
      %p121 = scmp.eq.s32.totalorder %s18, 0
      %p122 = por %p120, %p121
      %p123 = scmp.ne.s32.totalorder %s115, %s117
      %p124 = scmp.eq.s32.totalorder %s23, 1
      %p125 = por %p123, %p124
      %p126 = scmp.ne.s32.totalorder %s117, %s118
      %p127 = scmp.eq.s32.totalorder %s23, 0
      %p128 = por %p126, %p127
      %p129 = scmp.ne.s32.totalorder %s117, %s118
      %p130 = scmp.eq.s32.totalorder %s24, 1
      %p131 = por %p129, %p130
      %p133 = scmp.ne.s32.totalorder %s118, %s132
      %p134 = scmp.eq.s32.totalorder %s24, 0
      %p135 = por %p133, %p134
      %s137 = sadd.s32 %s136, 1
      %p140 = scmp.eq.s32.totalorder %s18, 1
      %p141 = scmp.ne.s32.totalorder %s136, %s138
      %p142 = scmp.eq.s32.totalorder %s18, 0
      %p143 = por %p141, %p142
      %p144 = scmp.ne.s32.totalorder %s136, %s138
      %p145 = scmp.eq.s32.totalorder %s23, 1
      %p146 = por %p144, %p145
      %p147 = scmp.ne.s32.totalorder %s138, %s139
      %p148 = scmp.eq.s32.totalorder %s23, 0
      %p149 = por %p147, %p148
      %p150 = scmp.ne.s32.totalorder %s138, %s139
      %p151 = scmp.eq.s32.totalorder %s24, 1
      %p152 = por %p150, %p151
      %p154 = scmp.ne.s32.totalorder %s139, %s153
      %p155 = scmp.eq.s32.totalorder %s24, 0
      %p156 = por %p154, %p155
      %s158 = sadd.s32 %s157, 1
      %p161 = scmp.eq.s32.totalorder %s18, 1
      %p162 = scmp.ne.s32.totalorder %s157, %s159
      %p163 = scmp.eq.s32.totalorder %s18, 0
      %p164 = por %p162, %p163
      %p165 = scmp.ne.s32.totalorder %s157, %s159
      %p166 = scmp.eq.s32.totalorder %s23, 1
      %p167 = por %p165, %p166
      %p168 = scmp.ne.s32.totalorder %s159, %s160
      %p169 = scmp.eq.s32.totalorder %s23, 0
      %p170 = por %p168, %p169
      %p171 = scmp.ne.s32.totalorder %s159, %s160
      %p172 = scmp.eq.s32.totalorder %s24, 1
      %p173 = por %p171, %p172
      %p175 = scmp.ne.s32.totalorder %s160, %s174
      %p176 = scmp.eq.s32.totalorder %s24, 0
      %p177 = por %p175, %p176
      %s178 = ssub.s32 %s18, %s25
      %p179 = scmp.eq.s32.totalorder %s178, 0
      %s181 = sadd.s32 %s180, 1
      %s182 = scalar_select %p179, %s180, %s181
      %p185 = pneg %p179
      %p186 = scmp.eq.s32.totalorder %s18, 1
      %p187 = por %p185, %p186
      %p188 = scmp.ne.s32.totalorder %s180, %s183
      %p189 = scmp.eq.s32.totalorder %s18, 0
      %p190 = por %p188, %p189
      %p191 = scmp.ne.s32.totalorder %s180, %s183
      %p192 = scmp.eq.s32.totalorder %s23, 1
      %p193 = por %p191, %p192
      %p194 = scmp.ne.s32.totalorder %s183, %s184
      %p195 = scmp.eq.s32.totalorder %s23, 0
      %p196 = por %p194, %p195
      %p197 = scmp.ne.s32.totalorder %s183, %s184
      %p198 = scmp.eq.s32.totalorder %s24, 1
      %p199 = por %p197, %p198
      %p201 = scmp.ne.s32.totalorder %s184, %s200
      %p202 = scmp.eq.s32.totalorder %s24, 0
      %p203 = por %p201, %p202
      %p204 = scmp.le.s32.totalorder 1, %s18
      %p205 = scmp.lt.s32.totalorder %s18, 3
      %p206 = pnand %p204, %p205
      %p207 = pneg %p206
      // Predicated region
      $region9: #{tpu_custom_call.1} parent=5 // pred_check
        _
      $region10: #{tpu_custom_call.1} parent=5 // pred_check_branch
        %209 = sbr.rel (%p206) target = $region12
      $region11: #{tpu_custom_call.1} parent=5 // pred_region
        %s210 = ssub.s32 %s18, 1
        // Predicated region
        $region13: #{tpu_custom_call.1} parent=11 // pred_check
          %p211 = pneg %p65
        $region14: #{tpu_custom_call.1} parent=11 // pred_check_branch
          %213 = sbr.rel (%p211) target = $region16
        $region15: #{tpu_custom_call.1} parent=11 // pred_region
          _
        $region16: #{tpu_custom_call.1} parent=11 // pred_fallthru
          _
        // Predicated region
        $region17: #{tpu_custom_call.1} parent=11 // pred_check
          %p214 = pneg %p86
        $region18: #{tpu_custom_call.1} parent=11 // pred_check_branch
          %216 = sbr.rel (%p214) target = $region20
        $region19: #{tpu_custom_call.1} parent=11 // pred_region
          _
        $region20: #{tpu_custom_call.1} parent=11 // pred_fallthru
          _
        // Predicated region
        $region21: #{tpu_custom_call.1} parent=11 // pred_check
          %p217 = pneg %p107
        $region22: #{tpu_custom_call.1} parent=11 // pred_check_branch
          %219 = sbr.rel (%p217) target = $region24
        $region23: #{tpu_custom_call.1} parent=11 // pred_region
          %s221 = ssub.s32 1024, 1024
          %222 = vsyncadd [#allocation3], %s221
          %s223 = sshll.u32 [#allocation2], 4
          %s224 = int_to_ptr.vmem [resolvable:$true] %s223
          %229 = dma.hbm_to_vmem [thread:$0]  %s3, 1024, %s224, [#allocation3], 64, 64, 4
        $region24: #{tpu_custom_call.1} parent=11 // pred_fallthru
          _
        // Predicated region
        $region25: #{tpu_custom_call.1} parent=11 // pred_check
          %p230 = pneg %p128
        $region26: #{tpu_custom_call.1} parent=11 // pred_check_branch
          %232 = sbr.rel (%p230) target = $region28
        $region27: #{tpu_custom_call.1} parent=11 // pred_region
          _
        $region28: #{tpu_custom_call.1} parent=11 // pred_fallthru
          _
        // Predicated region
        $region29: #{tpu_custom_call.1} parent=11 // pred_check
          %p233 = pneg %p149
        $region30: #{tpu_custom_call.1} parent=11 // pred_check_branch
          %235 = sbr.rel (%p233) target = $region32
        $region31: #{tpu_custom_call.1} parent=11 // pred_region
          %s237 = ssub.s32 1024, 1024
          %238 = vsyncadd [#allocation6], %s237
          %s239 = sshll.u32 [#allocation5], 4
          %s240 = int_to_ptr.vmem [resolvable:$true] %s239
          %245 = dma.hbm_to_vmem [thread:$0]  %s5, 1024, %s240, [#allocation6], 64, 64, 4
        $region32: #{tpu_custom_call.1} parent=11 // pred_fallthru
          _
        // Predicated region
        $region33: #{tpu_custom_call.1} parent=11 // pred_check
          %p246 = pneg %p170
        $region34: #{tpu_custom_call.1} parent=11 // pred_check_branch
          %248 = sbr.rel (%p246) target = $region36
        $region35: #{tpu_custom_call.1} parent=11 // pred_region
          _
        $region36: #{tpu_custom_call.1} parent=11 // pred_fallthru
          _
      $region12: #{tpu_custom_call.1} parent=5 // pred_fallthru
        _
      %p249 = scmp.lt.s32.totalorder %s18, 2
      // Predicated region
      $region37: #{tpu_custom_call.1} parent=5 // pred_check
        %p250 = pneg %p249
      $region38: #{tpu_custom_call.1} parent=5 // pred_check_branch
        %252 = sbr.rel (%p250) target = $region40
      $region39: #{tpu_custom_call.1} parent=5 // pred_region
        // Predicated region
        $region41: #{tpu_custom_call.1} parent=39 // pred_check
          %p253 = pneg %p38
        $region42: #{tpu_custom_call.1} parent=39 // pred_check_branch
          %255 = sbr.rel (%p253) target = $region44
        $region43: #{tpu_custom_call.1} parent=39 // pred_region
          %p256 = scmp.lt.s32.totalorder %s18, 1
          %s257 = scalar_select %p256, %s18, 1
          %s258 = smul.addr %s257, 8
          %s259 = scalar_lea.vmem %s0, %s258
        $region44: #{tpu_custom_call.1} parent=39 // pred_fallthru
          _
      $region40: #{tpu_custom_call.1} parent=5 // pred_fallthru
        _
      %p260 = scmp.le.s32.totalorder 1, %s18
      %p261 = scmp.lt.s32.totalorder %s18, 3
      %p262 = pnand %p260, %p261
      %p263 = pneg %p262
      // Predicated region
      $region45: #{tpu_custom_call.1} parent=5 // pred_check
        _
      $region46: #{tpu_custom_call.1} parent=5 // pred_check_branch
        %265 = sbr.rel (%p262) target = $region48
      $region47: #{tpu_custom_call.1} parent=5 // pred_region
        %s266 = ssub.s32 %s18, 1
        // Predicated region
        $region49: #{tpu_custom_call.1} parent=47 // pred_check
          %p267 = pneg %p107
        $region50: #{tpu_custom_call.1} parent=47 // pred_check_branch
          %269 = sbr.rel (%p267) target = $region52
        $region51: #{tpu_custom_call.1} parent=47 // pred_region
          %270 = dma.done [#allocation3], 1024
        $region52: #{tpu_custom_call.1} parent=47 // pred_fallthru
          _
        // Predicated region
        $region53: #{tpu_custom_call.1} parent=47 // pred_check
          %p271 = pneg %p149
        $region54: #{tpu_custom_call.1} parent=47 // pred_check_branch
          %273 = sbr.rel (%p271) target = $region56
        $region55: #{tpu_custom_call.1} parent=47 // pred_region
          %274 = dma.done [#allocation6], 1024
        $region56: #{tpu_custom_call.1} parent=47 // pred_fallthru
          _
        %p275 = scmp.lt.s32.totalorder %s23, 1
        %s276 = scalar_select %p275, %s23, 1
        %s277 = smul.addr %s276, 8
        %s278 = scalar_lea.vmem %s0, %s277
        %p279 = pneg %p44
        %p280 = pneg %p41
        %p281 = pneg %p65
        %p282 = pneg %p62
        %p283 = pneg %p86
        %p284 = pneg %p83
        %p285 = pneg %p107
        %p286 = pneg %p104
        %p287 = pneg %p128
        %p288 = pneg %p125
        %p289 = pneg %p149
        %p290 = pneg %p146
        %p291 = pneg %p170
        %p292 = pneg %p167
        %p293 = pneg %p196
        %p294 = pneg %p193
        %s295 = sand.u32 %s183, 1
        %s296 = scalar_lea.sflag [#allocation4], %s295
        %s297 = sand.u32 %s183, 1
        %s298 = smul.addr %s297, 8
        %s299 = scalar_lea.vmem [#allocation7], %s298
        %p300 = scmp.lt.s32.totalorder %s23, 1
        %s301 = scalar_select %p300, %s23, 1
        %s302 = smul.addr %s301, 8
        %s303 = scalar_lea.vmem %s0, %s302
        %v305 = vlaneseq
        %v306 = vand.u32 %v305, 127
        %vm307 = vcmp.lt.s32.totalorder %v306, 64
        %v308 = vsel %vm307, 1, 0
        %v309 = vcvt.s32.f32 %v308
        %v310 = vld [vmem:[%s303] sm:$0xff]
        %v311 = vpack.c.bf16 %v310, %v310
        %v312 = vld [vmem:[%s1] sm:$0x7]
        %v313 = vld [vmem:[%s2] sm:$0x7]
        %v315 = vlaneseq
        %v316 = vshrl.u32 %v315, 7
        %v317 = vsub.s32 0, %v316
        %v318 = vrot.slane %v313, %v317
        %v319 = vlaneseq
        %v320 = vshrl.u32 %v319, 7
        %v321 = vsub.s32 1, %v320
        %v322 = vrot.slane %v313, %v321
        %v323 = vlaneseq
        %v324 = vshrl.u32 %v323, 7
        %v325 = vsub.s32 2, %v324
        %v326 = vrot.slane %v313, %v325
        %v332 = vunpack.c.l.s4 1966171168
        %v333 = vunpack.c.0.s8 %v332
        %v334 = vlaneseq
        %v335 = vshrl.u32 %v334, 7
        %v336 = vsub.s32 %v333, %v335
        %v337 = vrot.slane %v312, %v336
        %v338 = vcombine.high %v337, %v337
        %v340 = vunpack.c.l.s4 1966171168
        %v341 = vunpack.c.0.s8 %v340
        %v342 = vlaneseq
        %v343 = vshrl.u32 %v342, 7
        %v344 = vsub.s32 %v341, %v343
        %v345 = vrot.slane %v337, %v344
        %v347 = vunpack.c.l.s4 1966171168
        %v348 = vunpack.c.0.s8 %v347
        %v349 = vlaneseq
        %v350 = vshrl.u32 %v349, 7
        %v351 = vsub.s32 %v348, %v350
        %v352 = vrot.slane %v338, %v351
        %v353 = vcombine.high %v345, %v345
        %vm354 = vcmask 15360
        %v356 = vsel %vm354, %v311, 0
        %vm358 = vcmask 1040384
        %v360 = vsel %vm358, %v345, 0
        %v363 = vsel %vm358, %v352, 0
        %v366 = vsel %vm358, %v353, 0
        %368 = vmatprep.subr.bf16.mxu0 %v363
        %369 = vmatpush1.bf16.msra.mxu0 %v360
        %370 = vmatprep.subr.bf16.mxu0 0
        %371 = vmatpush1.bf16.msra.mxu0 0
        %372 = vmatprep.subr.bf16.mxu0 0
        %373 = vmatpush1.bf16.msra.mxu0 0
        %374 = vmatprep.subr.bf16.mxu0 0
        %375 = vmatpush1.bf16.msra.mxu0 0
        %376 = vmatprep.subr.bf16.mxu0 0
        %377 = vmatpush1.bf16.msra.mxu0 0
        %378 = vmatprep.subr.bf16.mxu0 0
        %379 = vmatpush1.bf16.msra.mxu0 0
        %380 = vmatprep.subr.bf16.mxu0 0
        %381 = vmatpush1.bf16.msra.mxu0 0
        %382 = vmatprep.subr.bf16.mxu0 0
        %383 = vmatpush1.bf16.msra.mxu0 0
        %384 = vmatprep.subr.bf16.mxu0 0
        %385 = vmatpush1.bf16.msra.mxu0 0
        %386 = vmatprep.subr.bf16.mxu0 0
        %387 = vmatpush1.bf16.msra.mxu0 0
        %388 = vmatprep.subr.bf16.mxu0 0
        %389 = vmatpush1.bf16.msra.mxu0 0
        %390 = vmatprep.subr.bf16.mxu0 0
        %391 = vmatpush1.bf16.msra.mxu0 0
        %392 = vmatprep.subr.bf16.mxu0 0
        %393 = vmatpush1.bf16.msra.mxu0 0
        %394 = vmatprep.subr.bf16.mxu0 0
        %395 = vmatpush1.bf16.msra.mxu0 0
        %396 = vmatprep.subr.bf16.mxu0 0
        %397 = vmatpush1.bf16.msra.mxu0 0
        %398 = vmatprep.subr.bf16.mxu0 0
        %399 = vmatpush1.bf16.msra.mxu0 0
        %400 = vmatprep.mubr.bf16.mxu0 0
        %401 = vmatmul.mubr.bf16.gmra.mrb[0].mxu0 %v356
        %v402 = vpop.f32.mrb[0].mxu0
        %v403 = vadd.f32 %v318, %v402
        %v404 = vpop.f32.mrb[0].mxu0
        %v405 = vadd.f32 %v322, %v404
        %v406 = vpop.f32.mrb[0].mxu0
        %v407 = vpop.f32.mrb[0].mxu0
        %408 = vdwg.mxu0
        %409 = vmatprep.subr.bf16.mxu0 0
        %410 = vmatpush1.bf16.msra.mxu0 %v366
        %411 = vmatprep.subr.bf16.mxu0 0
        %412 = vmatpush1.bf16.msra.mxu0 0
        %413 = vmatprep.subr.bf16.mxu0 0
        %414 = vmatpush1.bf16.msra.mxu0 0
        %415 = vmatprep.subr.bf16.mxu0 0
        %416 = vmatpush1.bf16.msra.mxu0 0
        %417 = vmatprep.subr.bf16.mxu0 0
        %418 = vmatpush1.bf16.msra.mxu0 0
        %419 = vmatprep.subr.bf16.mxu0 0
        %420 = vmatpush1.bf16.msra.mxu0 0
        %421 = vmatprep.subr.bf16.mxu0 0
        %422 = vmatpush1.bf16.msra.mxu0 0
        %423 = vmatprep.subr.bf16.mxu0 0
        %424 = vmatpush1.bf16.msra.mxu0 0
        %425 = vmatprep.subr.bf16.mxu0 0
        %426 = vmatpush1.bf16.msra.mxu0 0
        %427 = vmatprep.subr.bf16.mxu0 0
        %428 = vmatpush1.bf16.msra.mxu0 0
        %429 = vmatprep.subr.bf16.mxu0 0
        %430 = vmatpush1.bf16.msra.mxu0 0
        %431 = vmatprep.subr.bf16.mxu0 0
        %432 = vmatpush1.bf16.msra.mxu0 0
        %433 = vmatprep.subr.bf16.mxu0 0
        %434 = vmatpush1.bf16.msra.mxu0 0
        %435 = vmatprep.subr.bf16.mxu0 0
        %436 = vmatpush1.bf16.msra.mxu0 0
        %437 = vmatprep.subr.bf16.mxu0 0
        %438 = vmatpush1.bf16.msra.mxu0 0
        %439 = vmatprep.subr.bf16.mxu0 0
        %440 = vmatpush1.bf16.msra.mxu0 0
        %441 = vmatprep.mubr.bf16.mxu0 0
        %442 = vmatmul.mubr.bf16.gmra.mrb[0].mxu0 %v356
        %v443 = vpop.f32.mrb[0].mxu0
        %v444 = vadd.f32 %v326, %v443
        %v445 = vpop.f32.mrb[0].mxu0
        %v446 = vpop.f32.mrb[0].mxu0
        %v447 = vpop.f32.mrb[0].mxu0
        %448 = vdwg.mxu0
        %v449 = vpack.c.bf16 %v403, %v403
        %v450 = vpack.c.bf16 %v405, %v405
        %451 = vmatprep.subr.bf16.mxu0 0
        %452 = vmatpush1.bf16.xpose.msra.mxu0 %v450
        %453 = vmatprep.subr.bf16.mxu0 0
        %454 = vmatpush1.bf16.xpose.msra.mxu0 0
        %455 = vmatprep.subr.bf16.mxu0 0
        %456 = vmatpush1.bf16.xpose.msra.mxu0 0
        %457 = vmatprep.subr.bf16.mxu0 0
        %458 = vmatpush1.bf16.xpose.msra.mxu0 0
        %459 = vmatprep.subr.bf16.mxu0 0
        %460 = vmatpush1.bf16.xpose.msra.mxu0 0
        %461 = vmatprep.subr.bf16.mxu0 0
        %462 = vmatpush1.bf16.xpose.msra.mxu0 0
        %463 = vmatprep.subr.bf16.mxu0 0
        %464 = vmatpush1.bf16.xpose.msra.mxu0 0
        %465 = vmatprep.subr.bf16.mxu0 0
        %466 = vmatpush1.bf16.xpose.msra.mxu0 0
        %467 = vmatprep.subr.bf16.mxu0 0
        %468 = vmatpush1.bf16.xpose.msra.mxu0 0
        %469 = vmatprep.subr.bf16.mxu0 0
        %470 = vmatpush1.bf16.xpose.msra.mxu0 0
        %471 = vmatprep.subr.bf16.mxu0 0
        %472 = vmatpush1.bf16.xpose.msra.mxu0 0
        %473 = vmatprep.subr.bf16.mxu0 0
        %474 = vmatpush1.bf16.xpose.msra.mxu0 0
        %475 = vmatprep.subr.bf16.mxu0 0
        %476 = vmatpush1.bf16.xpose.msra.mxu0 0
        %477 = vmatprep.subr.bf16.mxu0 0
        %478 = vmatpush1.bf16.xpose.msra.mxu0 0
        %479 = vmatprep.subr.bf16.mxu0 0
        %480 = vmatpush1.bf16.xpose.msra.mxu0 0
        %481 = vmatprep.subr.bf16.mxu0 0
        %482 = vmatpush1.bf16.xpose.msra.mxu0 0
        %483 = vmatprep.mubr.bf16.mxu0 0
        %484 = vmatmul.mubr.bf16.gmra.mrb[0].mxu0 %v449
        %v485 = vpop.f32.mrb[0].mxu0
        %v486 = vadd.f32 0.0, %v485
        %v487 = vpop.f32.mrb[0].mxu0
        %v488 = vpop.f32.mrb[0].mxu0
        %v489 = vpop.f32.mrb[0].mxu0
        %490 = vdwg.mxu0
        %vm491 = vcmask 64512
        %v492 = vsel %vm491, %v486, -inf
        %493 = vmax.xlane.f32.xlu0 %v492
        %v494 = vpop.xlane.xlu0 %493
        %v495 = vsub.f32 %v486, %v494
        %v496 = vmul.f32 %v495, 1.442695
        %v497 = vpow.pop %v496
        %v498 = vsel %vm491, %v497, 0.0
        %499 = vadd.xlane.f32.xlu0 %v498
        %v500 = vpop.xlane.xlu0 %499
        %v501 = vpack.c.bf16 %v497, %v497
        %v502 = vpack.c.bf16 %v444, %v444
        %v504 = vsel %vm491, %v501, 0
        %vm506 = vcmask 1043456
        %v508 = vsel %vm506, %v502, 0
        %510 = vmatprep.subr.bf16.mxu0 0
        %511 = vmatpush1.bf16.msra.mxu0 %v508
        %512 = vmatprep.subr.bf16.mxu0 0
        %513 = vmatpush1.bf16.msra.mxu0 0
        %514 = vmatprep.subr.bf16.mxu0 0
        %515 = vmatpush1.bf16.msra.mxu0 0
        %516 = vmatprep.subr.bf16.mxu0 0
        %517 = vmatpush1.bf16.msra.mxu0 0
        %518 = vmatprep.subr.bf16.mxu0 0
        %519 = vmatpush1.bf16.msra.mxu0 0
        %520 = vmatprep.subr.bf16.mxu0 0
        %521 = vmatpush1.bf16.msra.mxu0 0
        %522 = vmatprep.subr.bf16.mxu0 0
        %523 = vmatpush1.bf16.msra.mxu0 0
        %524 = vmatprep.subr.bf16.mxu0 0
        %525 = vmatpush1.bf16.msra.mxu0 0
        %526 = vmatprep.subr.bf16.mxu0 0
        %527 = vmatpush1.bf16.msra.mxu0 0
        %528 = vmatprep.subr.bf16.mxu0 0
        %529 = vmatpush1.bf16.msra.mxu0 0
        %530 = vmatprep.subr.bf16.mxu0 0
        %531 = vmatpush1.bf16.msra.mxu0 0
        %532 = vmatprep.subr.bf16.mxu0 0
        %533 = vmatpush1.bf16.msra.mxu0 0
        %534 = vmatprep.subr.bf16.mxu0 0
        %535 = vmatpush1.bf16.msra.mxu0 0
        %536 = vmatprep.subr.bf16.mxu0 0
        %537 = vmatpush1.bf16.msra.mxu0 0
        %538 = vmatprep.subr.bf16.mxu0 0
        %539 = vmatpush1.bf16.msra.mxu0 0
        %540 = vmatprep.subr.bf16.mxu0 0
        %541 = vmatpush1.bf16.msra.mxu0 0
        %542 = vmatprep.mubr.bf16.mxu0 0
        %543 = vmatmul.mubr.bf16.gmra.mrb[0].mxu0 %v504
        %v544 = vpop.f32.mrb[0].mxu0
        %v545 = vadd.f32 0.0, %v544
        %v546 = vpop.f32.mrb[0].mxu0
        %v547 = vpop.f32.mrb[0].mxu0
        %v548 = vpop.f32.mrb[0].mxu0
        %549 = vdwg.mxu0
        %v550 = vrcp.pop %v500
        %v551 = vmul.f32 1.0, %v550
        %v552 = vmul.f32 %v545, %v551
        %v553 = vadd.f32 %v552, %v403
        %554 = vadd.xlane.f32.xlu0 %v553
        %v555 = vpop.xlane.xlu0 %554
        %v556 = vrot.slane %v555, 4
        %v557 = vadd.f32 %v555, %v556
        %v558 = vrot.slane %v557, 2
        %v559 = vadd.f32 %v557, %v558
        %v560 = vrot.slane %v559, 1
        %v561 = vadd.f32 %v559, %v560
        %v562 = vmul.f32 %v553, %v553
        %563 = vadd.xlane.f32.xlu0 %v562
        %v564 = vpop.xlane.xlu0 %563
        %v565 = vrot.slane %v564, 4
        %v566 = vadd.f32 %v564, %v565
        %v567 = vrot.slane %v566, 2
        %v568 = vadd.f32 %v566, %v567
        %v569 = vrot.slane %v568, 1
        %v570 = vadd.f32 %v568, %v569
        %v571 = vrcp.pop 512.0
        %v572 = vmul.f32 %v561, %v571
        %v573 = vmul.f32 %v570, %v571
        %v574 = vmul.f32 %v572, %v572
        %v575 = vsub.f32 %v573, %v574
        %v576 = vmax.f32 %v575, 0.0
        %v577 = vsub.f32 %v553, %v572
        %v578 = vadd.f32 %v576, 1e-05
        %v579 = vrsqrt.pop %v578
        %v580 = vmul.f32 %v577, %v579
        %v581 = vmul.f32 %v580, %v309
        %v582 = vpack.c.bf16 %v581, %v581
        %v583 = vld [vmem:[#allocation2] sm:$0xf]
        %v584 = vld [vmem:[#allocation2 + $0x4] sm:$0xf]
        %v585 = vld [vmem:[#allocation2 + $0x8] sm:$0xf]
        %v586 = vld [vmem:[#allocation2 + $0xc] sm:$0xf]
        %v587 = vld [vmem:[#allocation2 + $0x10] sm:$0xf]
        %v588 = vld [vmem:[#allocation2 + $0x14] sm:$0xf]
        %v589 = vld [vmem:[#allocation2 + $0x18] sm:$0xf]
        %v590 = vld [vmem:[#allocation2 + $0x1c] sm:$0xf]
        %v591 = vld [vmem:[#allocation2 + $0x20] sm:$0xf]
        %v592 = vld [vmem:[#allocation2 + $0x24] sm:$0xf]
        %v593 = vld [vmem:[#allocation2 + $0x28] sm:$0xf]
        %v594 = vld [vmem:[#allocation2 + $0x2c] sm:$0xf]
        %v595 = vld [vmem:[#allocation2 + $0x30] sm:$0xf]
        %v596 = vld [vmem:[#allocation2 + $0x34] sm:$0xf]
        %v597 = vld [vmem:[#allocation2 + $0x38] sm:$0xf]
        %v598 = vld [vmem:[#allocation2 + $0x3c] sm:$0xf]
        %v599 = vld [vmem:[%s4] sm:$0x1]
        %v601 = vlaneseq
        %v602 = vshrl.u32 %v601, 7
        %v603 = vsub.s32 0, %v602
        %v604 = vrot.slane %v599, %v603
        %v622 = vunpack.c.l.b16 %v583
        %v623 = vunpack.c.l.b16 %v584
        %v624 = vunpack.c.l.b16 %v585
        %v625 = vunpack.c.l.b16 %v586
        %v626 = vunpack.c.l.b16 %v587
        %v627 = vunpack.c.l.b16 %v588
        %v628 = vunpack.c.l.b16 %v589
        %v629 = vunpack.c.l.b16 %v590
        %v630 = vunpack.c.l.b16 %v591
        %v631 = vunpack.c.l.b16 %v592
        %v632 = vunpack.c.l.b16 %v593
        %v633 = vunpack.c.l.b16 %v594
        %v634 = vunpack.c.l.b16 %v595
        %v635 = vunpack.c.l.b16 %v596
        %v636 = vunpack.c.l.b16 %v597
        %v637 = vunpack.c.l.b16 %v598
        %v638 = vpack.c.b16 %v623, %v622
        %v639 = vpack.c.b16 %v625, %v624
        %v640 = vpack.c.b16 %v627, %v626
        %v641 = vpack.c.b16 %v629, %v628
        %v642 = vpack.c.b16 %v631, %v630
        %v643 = vpack.c.b16 %v633, %v632
        %v644 = vpack.c.b16 %v635, %v634
        %v645 = vpack.c.b16 %v637, %v636
        %654 = vmatprep.subr.bf16.mxu0 0
        %655 = vmatpush1.bf16.msra.mxu0 %v638
        %656 = vmatprep.subr.bf16.mxu0 0
        %657 = vmatpush1.bf16.msra.mxu0 %v639
        %658 = vmatprep.subr.bf16.mxu0 0
        %659 = vmatpush1.bf16.msra.mxu0 %v640
        %660 = vmatprep.subr.bf16.mxu0 0
        %661 = vmatpush1.bf16.msra.mxu0 %v641
        %662 = vmatprep.subr.bf16.mxu0 0
        %663 = vmatpush1.bf16.msra.mxu0 %v642
        %664 = vmatprep.subr.bf16.mxu0 0
        %665 = vmatpush1.bf16.msra.mxu0 %v643
        %666 = vmatprep.subr.bf16.mxu0 0
        %667 = vmatpush1.bf16.msra.mxu0 %v644
        %668 = vmatprep.subr.bf16.mxu0 0
        %669 = vmatpush1.bf16.msra.mxu0 %v645
        %670 = vmatprep.subr.bf16.mxu0 0
        %671 = vmatpush1.bf16.msra.mxu0 0
        %672 = vmatprep.subr.bf16.mxu0 0
        %673 = vmatpush1.bf16.msra.mxu0 0
        %674 = vmatprep.subr.bf16.mxu0 0
        %675 = vmatpush1.bf16.msra.mxu0 0
        %676 = vmatprep.subr.bf16.mxu0 0
        %677 = vmatpush1.bf16.msra.mxu0 0
        %678 = vmatprep.subr.bf16.mxu0 0
        %679 = vmatpush1.bf16.msra.mxu0 0
        %680 = vmatprep.subr.bf16.mxu0 0
        %681 = vmatpush1.bf16.msra.mxu0 0
        %682 = vmatprep.subr.bf16.mxu0 0
        %683 = vmatpush1.bf16.msra.mxu0 0
        %684 = vmatprep.subr.bf16.mxu0 0
        %685 = vmatpush1.bf16.msra.mxu0 0
        %686 = vmatprep.mubr.bf16.mxu0 0
        %687 = vmatmul.mubr.bf16.gmra.mrb[0].mxu0 %v582
        %v688 = vpop.f32.mrb[0].mxu0
        %v689 = vadd.f32 %v604, %v688
        %v690 = vpop.f32.mrb[0].mxu0
        %v691 = vpop.f32.mrb[0].mxu0
        %v692 = vpop.f32.mrb[0].mxu0
        %693 = vdwg.mxu0
        %v694 = vmax.f32 %v689, 0.0
        %v695 = vpack.c.bf16 %v694, %v694
        %v696 = vld [vmem:[#allocation5] sm:$0xf]
        %v697 = vld [vmem:[#allocation5 + $0x4] sm:$0xf]
        %v698 = vld [vmem:[#allocation5 + $0x8] sm:$0xf]
        %v699 = vld [vmem:[#allocation5 + $0xc] sm:$0xf]
        %v700 = vld [vmem:[#allocation5 + $0x10] sm:$0xf]
        %v701 = vld [vmem:[#allocation5 + $0x14] sm:$0xf]
        %v702 = vld [vmem:[#allocation5 + $0x18] sm:$0xf]
        %v703 = vld [vmem:[#allocation5 + $0x1c] sm:$0xf]
        %v704 = vld [vmem:[#allocation5 + $0x20] sm:$0xf]
        %v705 = vld [vmem:[#allocation5 + $0x24] sm:$0xf]
        %v706 = vld [vmem:[#allocation5 + $0x28] sm:$0xf]
        %v707 = vld [vmem:[#allocation5 + $0x2c] sm:$0xf]
        %v708 = vld [vmem:[#allocation5 + $0x30] sm:$0xf]
        %v709 = vld [vmem:[#allocation5 + $0x34] sm:$0xf]
        %v710 = vld [vmem:[#allocation5 + $0x38] sm:$0xf]
        %v711 = vld [vmem:[#allocation5 + $0x3c] sm:$0xf]
        %v712 = vld [vmem:[%s6] sm:$0x1]
        %v714 = vlaneseq
        %v715 = vshrl.u32 %v714, 7
        %v716 = vsub.s32 0, %v715
        %v717 = vrot.slane %v712, %v716
        %v735 = vunpack.c.l.b16 %v696
        %v736 = vunpack.c.l.b16 %v697
        %v737 = vunpack.c.l.b16 %v698
        %v738 = vunpack.c.l.b16 %v699
        %v739 = vunpack.c.l.b16 %v700
        %v740 = vunpack.c.l.b16 %v701
        %v741 = vunpack.c.l.b16 %v702
        %v742 = vunpack.c.l.b16 %v703
        %v743 = vunpack.c.l.b16 %v704
        %v744 = vunpack.c.l.b16 %v705
        %v745 = vunpack.c.l.b16 %v706
        %v746 = vunpack.c.l.b16 %v707
        %v747 = vunpack.c.l.b16 %v708
        %v748 = vunpack.c.l.b16 %v709
        %v749 = vunpack.c.l.b16 %v710
        %v750 = vunpack.c.l.b16 %v711
        %v751 = vpack.c.b16 %v736, %v735
        %v752 = vpack.c.b16 %v738, %v737
        %v753 = vpack.c.b16 %v740, %v739
        %v754 = vpack.c.b16 %v742, %v741
        %v755 = vpack.c.b16 %v744, %v743
        %v756 = vpack.c.b16 %v746, %v745
        %v757 = vpack.c.b16 %v748, %v747
        %v758 = vpack.c.b16 %v750, %v749
        %767 = vmatprep.subr.bf16.mxu0 0
        %768 = vmatpush1.bf16.msra.mxu0 %v751
        %769 = vmatprep.subr.bf16.mxu0 0
        %770 = vmatpush1.bf16.msra.mxu0 %v752
        %771 = vmatprep.subr.bf16.mxu0 0
        %772 = vmatpush1.bf16.msra.mxu0 %v753
        %773 = vmatprep.subr.bf16.mxu0 0
        %774 = vmatpush1.bf16.msra.mxu0 %v754
        %775 = vmatprep.subr.bf16.mxu0 0
        %776 = vmatpush1.bf16.msra.mxu0 %v755
        %777 = vmatprep.subr.bf16.mxu0 0
        %778 = vmatpush1.bf16.msra.mxu0 %v756
        %779 = vmatprep.subr.bf16.mxu0 0
        %780 = vmatpush1.bf16.msra.mxu0 %v757
        %781 = vmatprep.subr.bf16.mxu0 0
        %782 = vmatpush1.bf16.msra.mxu0 %v758
        %783 = vmatprep.subr.bf16.mxu0 0
        %784 = vmatpush1.bf16.msra.mxu0 0
        %785 = vmatprep.subr.bf16.mxu0 0
        %786 = vmatpush1.bf16.msra.mxu0 0
        %787 = vmatprep.subr.bf16.mxu0 0
        %788 = vmatpush1.bf16.msra.mxu0 0
        %789 = vmatprep.subr.bf16.mxu0 0
        %790 = vmatpush1.bf16.msra.mxu0 0
        %791 = vmatprep.subr.bf16.mxu0 0
        %792 = vmatpush1.bf16.msra.mxu0 0
        %793 = vmatprep.subr.bf16.mxu0 0
        %794 = vmatpush1.bf16.msra.mxu0 0
        %795 = vmatprep.subr.bf16.mxu0 0
        %796 = vmatpush1.bf16.msra.mxu0 0
        %797 = vmatprep.subr.bf16.mxu0 0
        %798 = vmatpush1.bf16.msra.mxu0 0
        %799 = vmatprep.mubr.bf16.mxu0 0
        %800 = vmatmul.mubr.bf16.gmra.mrb[0].mxu0 %v695
        %v801 = vpop.f32.mrb[0].mxu0
        %v802 = vadd.f32 %v717, %v801
        %v803 = vpop.f32.mrb[0].mxu0
        %v804 = vpop.f32.mrb[0].mxu0
        %v805 = vpop.f32.mrb[0].mxu0
        %806 = vdwg.mxu0
        %v807 = vadd.f32 %v581, %v802
        %808 = vadd.xlane.f32.xlu0 %v807
        %v809 = vpop.xlane.xlu0 %808
        %v810 = vrot.slane %v809, 4
        %v811 = vadd.f32 %v809, %v810
        %v812 = vrot.slane %v811, 2
        %v813 = vadd.f32 %v811, %v812
        %v814 = vrot.slane %v813, 1
        %v815 = vadd.f32 %v813, %v814
        %v816 = vmul.f32 %v807, %v807
        %817 = vadd.xlane.f32.xlu0 %v816
        %v818 = vpop.xlane.xlu0 %817
        %v819 = vrot.slane %v818, 4
        %v820 = vadd.f32 %v818, %v819
        %v821 = vrot.slane %v820, 2
        %v822 = vadd.f32 %v820, %v821
        %v823 = vrot.slane %v822, 1
        %v824 = vadd.f32 %v822, %v823
        %v825 = vmul.f32 %v815, %v571
        %v826 = vmul.f32 %v824, %v571
        %v827 = vmul.f32 %v825, %v825
        %v828 = vsub.f32 %v826, %v827
        %v829 = vmax.f32 %v828, 0.0
        %v830 = vsub.f32 %v807, %v825
        %v831 = vadd.f32 %v829, 1e-05
        %v832 = vrsqrt.pop %v831
        %v833 = vmul.f32 %v830, %v832
        %v834 = vmul.f32 %v833, %v309
        %835 = vst [vmem:[%s299] sm:$0xff] %v834
        %s836 = sand.u32 %s183, 1
        %s837 = scalar_lea.sflag [#allocation4], %s836
        %s838 = sand.u32 %s183, 1
        %s839 = smul.addr %s838, 8
        %s840 = scalar_lea.vmem [#allocation7], %s839
        // Predicated region
        $region57: #{tpu_custom_call.1} parent=47 // pred_check
          %p841 = pneg %p193
        $region58: #{tpu_custom_call.1} parent=47 // pred_check_branch
          %843 = sbr.rel (%p841) target = $region60
        $region59: #{tpu_custom_call.1} parent=47 // pred_region
          %s845 = ssub.s32 128, 128
          %846 = vsyncadd %s837, %s845
          %s847 = smul.addr %s23, 128
          %s848 = scalar_lea.hbm %s7, %s847
          %s850 = sshll.u32 %s840, 4
          %s851 = int_to_ptr.vmem [resolvable:$true] %s850
          %853 = dma.vmem_to_hbm [thread:$0]  %s851, 128, %s848, %s837
        $region60: #{tpu_custom_call.1} parent=47 // pred_fallthru
          _
      $region48: #{tpu_custom_call.1} parent=5 // pred_fallthru
        _
      %p854 = scmp.le.s32.totalorder 2, %s18
      // Predicated region
      $region61: #{tpu_custom_call.1} parent=5 // pred_check
        %p855 = pneg %p854
      $region62: #{tpu_custom_call.1} parent=5 // pred_check_branch
        %857 = sbr.rel (%p855) target = $region64
      $region63: #{tpu_custom_call.1} parent=5 // pred_region
        %s858 = ssub.s32 %s18, 2
        // Predicated region
        $region65: #{tpu_custom_call.1} parent=63 // pred_check
          %p859 = pneg %p199
        $region66: #{tpu_custom_call.1} parent=63 // pred_check_branch
          %861 = sbr.rel (%p859) target = $region68
        $region67: #{tpu_custom_call.1} parent=63 // pred_region
          %s862 = sand.u32 %s184, 1
          %s863 = scalar_lea.sflag [#allocation4], %s862
          %s864 = sand.u32 %s184, 1
          %s865 = smul.addr %s864, 8
          %s866 = scalar_lea.vmem [#allocation7], %s865
          %867 = dma.done %s863, 128
        $region68: #{tpu_custom_call.1} parent=63 // pred_fallthru
          _
      $region64: #{tpu_custom_call.1} parent=5 // pred_fallthru
        _
    $region6: #{tpu_custom_call.1} parent=1 // loop_footer
      %s22 = sadd.s32 1, %s18
    $region7: #{tpu_custom_call.1} parent=1 // loop_footer_branch
      %17 = sbr.rel target = $region3
    $region8: #{tpu_custom_call.1} parent=1 // loop_exit
      _
    %868 = vsyncpa [#allocation3], 1
    %s869 = scalar_lea.sflag [#allocation3], 1
    %870 = vsyncpa %s869, 1
    %871 = vsyncpa [#allocation6], 1
    %872 = vsyncpa [#allocation4], 1
    %s873 = scalar_lea.sflag [#allocation4], 1
    %874 = vsyncpa %s873, 1

// kernel: tpu_custom_call.1
$region0: #{tpu_custom_call.1}
  #allocation0 [shape = 'u32[]', space=smem, size = 0x4, offset = 0x4, fixed_abs, tag = 'smem constant byte address 0x4 - core index']
  #allocation1 [shape = 'u32[144,128]{1,0:T(1,128)}', space=vmem, size = 0x12000, scoped, tag = 'internal scratch']
  %s0 = inlined_call_operand.vmem [shape: f32[2,8,2], index: 0, kind: input, shape index: {}]
  %s1 = inlined_call_operand.vmem [shape: bf16[2,384], index: 1, kind: input, shape index: {}]
  %s2 = inlined_call_operand.vmem [shape: f32[1,384], index: 2, kind: input, shape index: {}]
  %s3 = inlined_call_operand.hbm [shape: bf16[128,128], index: 3, kind: input, shape index: {}]
  %s4 = inlined_call_operand.vmem [shape: f32[1,128], index: 4, kind: input, shape index: {}]
  %s5 = inlined_call_operand.hbm [shape: bf16[128,128], index: 5, kind: input, shape index: {}]
  %s6 = inlined_call_operand.vmem [shape: f32[1,128], index: 6, kind: input, shape index: {}]
  %s7 = inlined_call_operand.hbm [shape: f32[2,8,128], index: 7, kind: output, shape index: {}]
  %s8 = sld [smem:[#allocation0]]
  $region69: #{tpu_custom_call.1} parent=0
    _
  %s10 = ssub.s32 1, %s8
  %s11 = scalar_select 0, %s10, %s8
  $region1: #{tpu_custom_call.1} parent=0
    #allocation2 [shape = 'u8[32768]{0}', space=vmem, size = 0x8000, scoped, tag = 'input window, operand 3, single buffered']
    #allocation3 [shape = 's32[2]{0}', space=sflag, size = 0x8, scoped, tag = 'scoped memory for tpu_custom_call.1']
    #allocation4 [shape = 's32[2]{0}', space=sflag, size = 0x8, scoped, tag = 'scoped memory for tpu_custom_call.1']
    #allocation5 [shape = 'u8[32768]{0}', space=vmem, size = 0x8000, scoped, tag = 'input window, operand 5, single buffered']
    #allocation6 [shape = 's32[1]{0}', space=sflag, size = 0x4, scoped, tag = 'scoped memory for tpu_custom_call.1']
    #allocation7 [shape = 'u8[8192]{0}', space=vmem, size = 0x2000, scoped, tag = 'output window, operand 0']
    %12 = vsyncpa [#allocation3], 0
    %13 = vsyncpa [#allocation6], 0
    %14 = vsyncpa [#allocation4], 0
    %s15 = scalar_lea.sflag [#allocation4], 1
    %16 = vsyncpa %s15, 0
    loop: start=0, step=1, limit=4
    $region2: #{tpu_custom_call.1} parent=1 // loop_pre_header
      _
    $region3: #{tpu_custom_call.1} parent=1 // loop_header
      %s18 = sphi 0, %s22
      %p19 = scmp.ge.s32.totalorder %s18, 4
      %s28 = sphi 0, %s30
      %s31 = sphi 0, %s28
      %s32 = sphi 0, %s31
      %s48 = sphi 0, %s32
      %s52 = sphi 0, %s52
      %s54 = sphi 0, %s52
      %s55 = sphi 0, %s54
      %s69 = sphi 0, %s55
      %s73 = sphi 0, %s73
      %s75 = sphi 0, %s73
      %s76 = sphi 0, %s75
      %s90 = sphi 0, %s76
      %s94 = sphi 0, %s94
      %s96 = sphi 0, %s94
      %s97 = sphi 0, %s96
      %s111 = sphi 0, %s97
      %s115 = sphi 0, %s115
      %s117 = sphi 0, %s115
      %s118 = sphi 0, %s117
      %s132 = sphi 0, %s118
      %s136 = sphi 0, %s136
      %s138 = sphi 0, %s136
      %s139 = sphi 0, %s138
      %s153 = sphi 0, %s139
      %s157 = sphi 0, %s157
      %s159 = sphi 0, %s157
      %s160 = sphi 0, %s159
      %s174 = sphi 0, %s160
      %s180 = sphi 0, %s182
      %s183 = sphi 0, %s180
      %s184 = sphi 0, %s183
      %s200 = sphi 0, %s184
    $region4: #{tpu_custom_call.1} parent=1 // loop_header_branch
      %21 = sbr.rel (%p19) target = $region8
    $region5: #{tpu_custom_call.1} parent=1 // loop_body
      %s23 = ssub.s32 %s18, 1
      %s24 = ssub.s32 %s18, 2
      %s25 = sadd.s32 %s18, 1
      %s26 = ssub.s32 %s18, %s25
      %p27 = scmp.eq.s32.totalorder %s26, 0
      %s29 = sadd.s32 %s28, 1
      %s30 = scalar_select %p27, %s28, %s29
      %p33 = pneg %p27
      %p34 = scmp.eq.s32.totalorder %s18, 1
      %p35 = por %p33, %p34
      %p36 = scmp.ne.s32.totalorder %s28, %s31
      %p37 = scmp.eq.s32.totalorder %s18, 0
      %p38 = por %p36, %p37
      %p39 = scmp.ne.s32.totalorder %s28, %s31
      %p40 = scmp.eq.s32.totalorder %s23, 1
      %p41 = por %p39, %p40
      %p42 = scmp.ne.s32.totalorder %s31, %s32
      %p43 = scmp.eq.s32.totalorder %s23, 0
      %p44 = por %p42, %p43
      %p45 = scmp.ne.s32.totalorder %s31, %s32
      %p46 = scmp.eq.s32.totalorder %s24, 1
      %p47 = por %p45, %p46
      %p49 = scmp.ne.s32.totalorder %s32, %s48
      %p50 = scmp.eq.s32.totalorder %s24, 0
      %p51 = por %p49, %p50
      %s53 = sadd.s32 %s52, 1
      %p56 = scmp.eq.s32.totalorder %s18, 1
      %p57 = scmp.ne.s32.totalorder %s52, %s54
      %p58 = scmp.eq.s32.totalorder %s18, 0
      %p59 = por %p57, %p58
      %p60 = scmp.ne.s32.totalorder %s52, %s54
      %p61 = scmp.eq.s32.totalorder %s23, 1
      %p62 = por %p60, %p61
      %p63 = scmp.ne.s32.totalorder %s54, %s55
      %p64 = scmp.eq.s32.totalorder %s23, 0
      %p65 = por %p63, %p64
      %p66 = scmp.ne.s32.totalorder %s54, %s55
      %p67 = scmp.eq.s32.totalorder %s24, 1
      %p68 = por %p66, %p67
      %p70 = scmp.ne.s32.totalorder %s55, %s69
      %p71 = scmp.eq.s32.totalorder %s24, 0
      %p72 = por %p70, %p71
      %s74 = sadd.s32 %s73, 1
      %p77 = scmp.eq.s32.totalorder %s18, 1
      %p78 = scmp.ne.s32.totalorder %s73, %s75
      %p79 = scmp.eq.s32.totalorder %s18, 0
      %p80 = por %p78, %p79
      %p81 = scmp.ne.s32.totalorder %s73, %s75
      %p82 = scmp.eq.s32.totalorder %s23, 1
      %p83 = por %p81, %p82
      %p84 = scmp.ne.s32.totalorder %s75, %s76
      %p85 = scmp.eq.s32.totalorder %s23, 0
      %p86 = por %p84, %p85
      %p87 = scmp.ne.s32.totalorder %s75, %s76
      %p88 = scmp.eq.s32.totalorder %s24, 1
      %p89 = por %p87, %p88
      %p91 = scmp.ne.s32.totalorder %s76, %s90
      %p92 = scmp.eq.s32.totalorder %s24, 0
      %p93 = por %p91, %p92
      %s95 = sadd.s32 %s94, 1
      %p98 = scmp.eq.s32.totalorder %s18, 1
      %p99 = scmp.ne.s32.totalorder %s94, %s96
      %p100 = scmp.eq.s32.totalorder %s18, 0
      %p101 = por %p99, %p100
      %p102 = scmp.ne.s32.totalorder %s94, %s96
      %p103 = scmp.eq.s32.totalorder %s23, 1
      %p104 = por %p102, %p103
      %p105 = scmp.ne.s32.totalorder %s96, %s97
      %p106 = scmp.eq.s32.totalorder %s23, 0
      %p107 = por %p105, %p106
      %p108 = scmp.ne.s32.totalorder %s96, %s97
      %p109 = scmp.eq.s32.totalorder %s24, 1
      %p110 = por %p108, %p109
      %p112 = scmp.ne.s32.totalorder %s97, %s111
      %p113 = scmp.eq.s32.totalorder %s24, 0
      %p114 = por %p112, %p113
      %s116 = sadd.s32 %s115, 1
      %p119 = scmp.eq.s32.totalorder %s18, 1
      %p120 = scmp.ne.s32.totalorder %s115, %s117
      %p121 = scmp.eq.s32.totalorder %s18, 0
      %p122 = por %p120, %p121
      %p123 = scmp.ne.s32.totalorder %s115, %s117
      %p124 = scmp.eq.s32.totalorder %s23, 1
      %p125 = por %p123, %p124
      %p126 = scmp.ne.s32.totalorder %s117, %s118
      %p127 = scmp.eq.s32.totalorder %s23, 0
      %p128 = por %p126, %p127
      %p129 = scmp.ne.s32.totalorder %s117, %s118
      %p130 = scmp.eq.s32.totalorder %s24, 1
      %p131 = por %p129, %p130
      %p133 = scmp.ne.s32.totalorder %s118, %s132
      %p134 = scmp.eq.s32.totalorder %s24, 0
      %p135 = por %p133, %p134
      %s137 = sadd.s32 %s136, 1
      %p140 = scmp.eq.s32.totalorder %s18, 1
      %p141 = scmp.ne.s32.totalorder %s136, %s138
      %p142 = scmp.eq.s32.totalorder %s18, 0
      %p143 = por %p141, %p142
      %p144 = scmp.ne.s32.totalorder %s136, %s138
      %p145 = scmp.eq.s32.totalorder %s23, 1
      %p146 = por %p144, %p145
      %p147 = scmp.ne.s32.totalorder %s138, %s139
      %p148 = scmp.eq.s32.totalorder %s23, 0
      %p149 = por %p147, %p148
      %p150 = scmp.ne.s32.totalorder %s138, %s139
      %p151 = scmp.eq.s32.totalorder %s24, 1
      %p152 = por %p150, %p151
      %p154 = scmp.ne.s32.totalorder %s139, %s153
      %p155 = scmp.eq.s32.totalorder %s24, 0
      %p156 = por %p154, %p155
      %s158 = sadd.s32 %s157, 1
      %p161 = scmp.eq.s32.totalorder %s18, 1
      %p162 = scmp.ne.s32.totalorder %s157, %s159
      %p163 = scmp.eq.s32.totalorder %s18, 0
      %p164 = por %p162, %p163
      %p165 = scmp.ne.s32.totalorder %s157, %s159
      %p166 = scmp.eq.s32.totalorder %s23, 1
      %p167 = por %p165, %p166
      %p168 = scmp.ne.s32.totalorder %s159, %s160
      %p169 = scmp.eq.s32.totalorder %s23, 0
      %p170 = por %p168, %p169
      %p171 = scmp.ne.s32.totalorder %s159, %s160
      %p172 = scmp.eq.s32.totalorder %s24, 1
      %p173 = por %p171, %p172
      %p175 = scmp.ne.s32.totalorder %s160, %s174
      %p176 = scmp.eq.s32.totalorder %s24, 0
      %p177 = por %p175, %p176
      %s178 = ssub.s32 %s18, %s25
      %p179 = scmp.eq.s32.totalorder %s178, 0
      %s181 = sadd.s32 %s180, 1
      %s182 = scalar_select %p179, %s180, %s181
      %p185 = pneg %p179
      %p186 = scmp.eq.s32.totalorder %s18, 1
      %p187 = por %p185, %p186
      %p188 = scmp.ne.s32.totalorder %s180, %s183
      %p189 = scmp.eq.s32.totalorder %s18, 0
      %p190 = por %p188, %p189
      %p191 = scmp.ne.s32.totalorder %s180, %s183
      %p192 = scmp.eq.s32.totalorder %s23, 1
      %p193 = por %p191, %p192
      %p194 = scmp.ne.s32.totalorder %s183, %s184
      %p195 = scmp.eq.s32.totalorder %s23, 0
      %p196 = por %p194, %p195
      %p197 = scmp.ne.s32.totalorder %s183, %s184
      %p198 = scmp.eq.s32.totalorder %s24, 1
      %p199 = por %p197, %p198
      %p201 = scmp.ne.s32.totalorder %s184, %s200
      %p202 = scmp.eq.s32.totalorder %s24, 0
      %p203 = por %p201, %p202
      %p204 = scmp.le.s32.totalorder 1, %s18
      %p205 = scmp.lt.s32.totalorder %s18, 3
      %p206 = pnand %p204, %p205
      %p207 = pneg %p206
      // Predicated region
      $region9: #{tpu_custom_call.1} parent=5 // pred_check
        _
      $region10: #{tpu_custom_call.1} parent=5 // pred_check_branch
        %209 = sbr.rel (%p206) target = $region12
      $region11: #{tpu_custom_call.1} parent=5 // pred_region
        %s210 = ssub.s32 %s18, 1
        // Predicated region
        $region13: #{tpu_custom_call.1} parent=11 // pred_check
          %p211 = pneg %p65
        $region14: #{tpu_custom_call.1} parent=11 // pred_check_branch
          %213 = sbr.rel (%p211) target = $region16
        $region15: #{tpu_custom_call.1} parent=11 // pred_region
          _
        $region16: #{tpu_custom_call.1} parent=11 // pred_fallthru
          _
        // Predicated region
        $region17: #{tpu_custom_call.1} parent=11 // pred_check
          %p214 = pneg %p86
        $region18: #{tpu_custom_call.1} parent=11 // pred_check_branch
          %216 = sbr.rel (%p214) target = $region20
        $region19: #{tpu_custom_call.1} parent=11 // pred_region
          _
        $region20: #{tpu_custom_call.1} parent=11 // pred_fallthru
          _
        // Predicated region
        $region21: #{tpu_custom_call.1} parent=11 // pred_check
          %p217 = pneg %p107
        $region22: #{tpu_custom_call.1} parent=11 // pred_check_branch
          %219 = sbr.rel (%p217) target = $region24
        $region23: #{tpu_custom_call.1} parent=11 // pred_region
          %s221 = ssub.s32 1024, 1024
          %222 = vsyncadd [#allocation3], %s221
          %s223 = sshll.u32 [#allocation2], 4
          %s224 = int_to_ptr.vmem [resolvable:$true] %s223
          %229 = dma.hbm_to_vmem [thread:$0]  %s3, 1024, %s224, [#allocation3], 64, 64, 4
        $region24: #{tpu_custom_call.1} parent=11 // pred_fallthru
          _
        // Predicated region
        $region25: #{tpu_custom_call.1} parent=11 // pred_check
          %p230 = pneg %p128
        $region26: #{tpu_custom_call.1} parent=11 // pred_check_branch
          %232 = sbr.rel (%p230) target = $region28
        $region27: #{tpu_custom_call.1} parent=11 // pred_region
          _
        $region28: #{tpu_custom_call.1} parent=11 // pred_fallthru
          _
        // Predicated region
        $region29: #{tpu_custom_call.1} parent=11 // pred_check
          %p233 = pneg %p149
        $region30: #{tpu_custom_call.1} parent=11 // pred_check_branch
          %235 = sbr.rel (%p233) target = $region32
        $region31: #{tpu_custom_call.1} parent=11 // pred_region
          %s237 = ssub.s32 1024, 1024
          %238 = vsyncadd [#allocation6], %s237
          %s239 = sshll.u32 [#allocation5], 4
          %s240 = int_to_ptr.vmem [resolvable:$true] %s239
          %245 = dma.hbm_to_vmem [thread:$0]  %s5, 1024, %s240, [#allocation6], 64, 64, 4
        $region32: #{tpu_custom_call.1} parent=11 // pred_fallthru
          _
        // Predicated region
        $region33: #{tpu_custom_call.1} parent=11 // pred_check
          %p246 = pneg %p170
        $region34: #{tpu_custom_call.1} parent=11 // pred_check_branch
          %248 = sbr.rel (%p246) target = $region36
        $region35: #{tpu_custom_call.1} parent=11 // pred_region
          _
        $region36: #{tpu_custom_call.1} parent=11 // pred_fallthru
          _
      $region12: #{tpu_custom_call.1} parent=5 // pred_fallthru
        _
      %p249 = scmp.lt.s32.totalorder %s18, 2
      // Predicated region
      $region37: #{tpu_custom_call.1} parent=5 // pred_check
        %p250 = pneg %p249
      $region38: #{tpu_custom_call.1} parent=5 // pred_check_branch
        %252 = sbr.rel (%p250) target = $region40
      $region39: #{tpu_custom_call.1} parent=5 // pred_region
        // Predicated region
        $region41: #{tpu_custom_call.1} parent=39 // pred_check
          %p253 = pneg %p38
        $region42: #{tpu_custom_call.1} parent=39 // pred_check_branch
          %255 = sbr.rel (%p253) target = $region44
        $region43: #{tpu_custom_call.1} parent=39 // pred_region
          %p256 = scmp.lt.s32.totalorder %s18, 1
          %s257 = scalar_select %p256, %s18, 1
          %s258 = smul.addr %s257, 8
          %s259 = scalar_lea.vmem %s0, %s258
        $region44: #{tpu_custom_call.1} parent=39 // pred_fallthru
          _
      $region40: #{tpu_custom_call.1} parent=5 // pred_fallthru
        _
      %p260 = scmp.le.s32.totalorder 1, %s18
      %p261 = scmp.lt.s32.totalorder %s18, 3
      %p262 = pnand %p260, %p261
      %p263 = pneg %p262
      // Predicated region
      $region45: #{tpu_custom_call.1} parent=5 // pred_check
        _
      $region46: #{tpu_custom_call.1} parent=5 // pred_check_branch
        %265 = sbr.rel (%p262) target = $region48
      $region47: #{tpu_custom_call.1} parent=5 // pred_region
        %s266 = ssub.s32 %s18, 1
        // Predicated region
        $region49: #{tpu_custom_call.1} parent=47 // pred_check
          %p267 = pneg %p107
        $region50: #{tpu_custom_call.1} parent=47 // pred_check_branch
          %269 = sbr.rel (%p267) target = $region52
        $region51: #{tpu_custom_call.1} parent=47 // pred_region
          %270 = dma.done [#allocation3], 1024
        $region52: #{tpu_custom_call.1} parent=47 // pred_fallthru
          _
        // Predicated region
        $region53: #{tpu_custom_call.1} parent=47 // pred_check
          %p271 = pneg %p149
        $region54: #{tpu_custom_call.1} parent=47 // pred_check_branch
          %273 = sbr.rel (%p271) target = $region56
        $region55: #{tpu_custom_call.1} parent=47 // pred_region
          %274 = dma.done [#allocation6], 1024
        $region56: #{tpu_custom_call.1} parent=47 // pred_fallthru
          _
        %p275 = scmp.lt.s32.totalorder %s23, 1
        %s276 = scalar_select %p275, %s23, 1
        %s277 = smul.addr %s276, 8
        %s278 = scalar_lea.vmem %s0, %s277
        %p279 = pneg %p44
        %p280 = pneg %p41
        %p281 = pneg %p65
        %p282 = pneg %p62
        %p283 = pneg %p86
        %p284 = pneg %p83
        %p285 = pneg %p107
        %p286 = pneg %p104
        %p287 = pneg %p128
        %p288 = pneg %p125
        %p289 = pneg %p149
        %p290 = pneg %p146
        %p291 = pneg %p170
        %p292 = pneg %p167
        %p293 = pneg %p196
        %p294 = pneg %p193
        %s295 = sand.u32 %s183, 1
        %s296 = scalar_lea.sflag [#allocation4], %s295
        %s297 = sand.u32 %s183, 1
        %s298 = smul.addr %s297, 8
        %s299 = scalar_lea.vmem [#allocation7], %s298
        %p300 = scmp.lt.s32.totalorder %s23, 1
        %s301 = scalar_select %p300, %s23, 1
        %s302 = smul.addr %s301, 8
        %s303 = scalar_lea.vmem %s0, %s302
        %v305 = vlaneseq
        %v306 = vand.u32 %v305, 127
        %vm307 = vcmp.lt.s32.totalorder %v306, 64
        %v308 = vsel %vm307, 1, 0
        %v309 = vcvt.s32.f32 %v308
        %v310 = vld [vmem:[%s303] sm:$0xff]
        %v311 = vpack.c.bf16 %v310, %v310
        %v312 = vld [vmem:[%s1] sm:$0x7]
        %v313 = vld [vmem:[%s2] sm:$0x7]
        %v315 = vlaneseq
        %v316 = vshrl.u32 %v315, 7
        %v317 = vsub.s32 0, %v316
        %v318 = vrot.slane %v313, %v317
        %v319 = vlaneseq
        %v320 = vshrl.u32 %v319, 7
        %v321 = vsub.s32 1, %v320
        %v322 = vrot.slane %v313, %v321
        %v323 = vlaneseq
        %v324 = vshrl.u32 %v323, 7
        %v325 = vsub.s32 2, %v324
        %v326 = vrot.slane %v313, %v325
        %v332 = vunpack.c.l.s4 1966171168
        %v333 = vunpack.c.0.s8 %v332
        %v334 = vlaneseq
        %v335 = vshrl.u32 %v334, 7
        %v336 = vsub.s32 %v333, %v335
        %v337 = vrot.slane %v312, %v336
        %v338 = vcombine.high %v337, %v337
        %v340 = vunpack.c.l.s4 1966171168
        %v341 = vunpack.c.0.s8 %v340
        %v342 = vlaneseq
        %v343 = vshrl.u32 %v342, 7
        %v344 = vsub.s32 %v341, %v343
        %v345 = vrot.slane %v337, %v344
        %v347 = vunpack.c.l.s4 1966171168
        %v348 = vunpack.c.0.s8 %v347
        %v349 = vlaneseq
        %v350 = vshrl.u32 %v349, 7
        %v351 = vsub.s32 %v348, %v350
        %v352 = vrot.slane %v338, %v351
        %v353 = vcombine.high %v345, %v345
        %vm354 = vcmask 15360
        %v356 = vsel %vm354, %v311, 0
        %vm358 = vcmask 1040384
        %v360 = vsel %vm358, %v345, 0
        %v363 = vsel %vm358, %v352, 0
        %v366 = vsel %vm358, %v353, 0
        %368 = vmatprep.subr.bf16.mxu0 %v363
        %369 = vmatpush1.bf16.msra.mxu0 %v360
        %370 = vmatprep.subr.bf16.mxu0 0
        %371 = vmatpush1.bf16.msra.mxu0 0
        %372 = vmatprep.subr.bf16.mxu0 0
        %373 = vmatpush1.bf16.msra.mxu0 0
        %374 = vmatprep.subr.bf16.mxu0 0
        %375 = vmatpush1.bf16.msra.mxu0 0
        %376 = vmatprep.subr.bf16.mxu0 0
        %377 = vmatpush1.bf16.msra.mxu0 0
        %378 = vmatprep.subr.bf16.mxu0 0
        %379 = vmatpush1.bf16.msra.mxu0 0
        %380 = vmatprep.subr.bf16.mxu0 0
        %381 = vmatpush1.bf16.msra.mxu0 0
        %382 = vmatprep.subr.bf16.mxu0 0
        %383 = vmatpush1.bf16.msra.mxu0 0
        %384 = vmatprep.subr.bf16.mxu0 0
        %385 = vmatpush1.bf16.msra.mxu0 0
        %386 = vmatprep.subr.bf16.mxu0 0
        %387 = vmatpush1.bf16.msra.mxu0 0
        %388 = vmatprep.subr.bf16.mxu0 0
        %389 = vmatpush1.bf16.msra.mxu0 0
        %390 = vmatprep.subr.bf16.mxu0 0
        %391 = vmatpush1.bf16.msra.mxu0 0
        %392 = vmatprep.subr.bf16.mxu0 0
        %393 = vmatpush1.bf16.msra.mxu0 0
        %394 = vmatprep.subr.bf16.mxu0 0
        %395 = vmatpush1.bf16.msra.mxu0 0
        %396 = vmatprep.subr.bf16.mxu0 0
        %397 = vmatpush1.bf16.msra.mxu0 0
        %398 = vmatprep.subr.bf16.mxu0 0
        %399 = vmatpush1.bf16.msra.mxu0 0
        %400 = vmatprep.mubr.bf16.mxu0 0
        %401 = vmatmul.mubr.bf16.gmra.mrb[0].mxu0 %v356
        %v402 = vpop.f32.mrb[0].mxu0
        %v403 = vadd.f32 %v318, %v402
        %v404 = vpop.f32.mrb[0].mxu0
        %v405 = vadd.f32 %v322, %v404
        %v406 = vpop.f32.mrb[0].mxu0
        %v407 = vpop.f32.mrb[0].mxu0
        %408 = vdwg.mxu0
        %409 = vmatprep.subr.bf16.mxu0 0
        %410 = vmatpush1.bf16.msra.mxu0 %v366
        %411 = vmatprep.subr.bf16.mxu0 0
        %412 = vmatpush1.bf16.msra.mxu0 0
        %413 = vmatprep.subr.bf16.mxu0 0
        %414 = vmatpush1.bf16.msra.mxu0 0
        %415 = vmatprep.subr.bf16.mxu0 0
        %416 = vmatpush1.bf16.msra.mxu0 0
        %417 = vmatprep.subr.bf16.mxu0 0
        %418 = vmatpush1.bf16.msra.mxu0 0
        %419 = vmatprep.subr.bf16.mxu0 0
        %420 = vmatpush1.bf16.msra.mxu0 0
        %421 = vmatprep.subr.bf16.mxu0 0
        %422 = vmatpush1.bf16.msra.mxu0 0
        %423 = vmatprep.subr.bf16.mxu0 0
        %424 = vmatpush1.bf16.msra.mxu0 0
        %425 = vmatprep.subr.bf16.mxu0 0
        %426 = vmatpush1.bf16.msra.mxu0 0
        %427 = vmatprep.subr.bf16.mxu0 0
        %428 = vmatpush1.bf16.msra.mxu0 0
        %429 = vmatprep.subr.bf16.mxu0 0
        %430 = vmatpush1.bf16.msra.mxu0 0
        %431 = vmatprep.subr.bf16.mxu0 0
        %432 = vmatpush1.bf16.msra.mxu0 0
        %433 = vmatprep.subr.bf16.mxu0 0
        %434 = vmatpush1.bf16.msra.mxu0 0
        %435 = vmatprep.subr.bf16.mxu0 0
        %436 = vmatpush1.bf16.msra.mxu0 0
        %437 = vmatprep.subr.bf16.mxu0 0
        %438 = vmatpush1.bf16.msra.mxu0 0
        %439 = vmatprep.subr.bf16.mxu0 0
        %440 = vmatpush1.bf16.msra.mxu0 0
        %441 = vmatprep.mubr.bf16.mxu0 0
        %442 = vmatmul.mubr.bf16.gmra.mrb[0].mxu0 %v356
        %v443 = vpop.f32.mrb[0].mxu0
        %v444 = vadd.f32 %v326, %v443
        %v445 = vpop.f32.mrb[0].mxu0
        %v446 = vpop.f32.mrb[0].mxu0
        %v447 = vpop.f32.mrb[0].mxu0
        %448 = vdwg.mxu0
        %v449 = vpack.c.bf16 %v403, %v403
        %v450 = vpack.c.bf16 %v405, %v405
        %451 = vmatprep.subr.bf16.mxu0 0
        %452 = vmatpush1.bf16.xpose.msra.mxu0 %v450
        %453 = vmatprep.subr.bf16.mxu0 0
        %454 = vmatpush1.bf16.xpose.msra.mxu0 0
        %455 = vmatprep.subr.bf16.mxu0 0
        %456 = vmatpush1.bf16.xpose.msra.mxu0 0
        %457 = vmatprep.subr.bf16.mxu0 0
        %458 = vmatpush1.bf16.xpose.msra.mxu0 0
        %459 = vmatprep.subr.bf16.mxu0 0
        %460 = vmatpush1.bf16.xpose.msra.mxu0 0
        %461 = vmatprep.subr.bf16.mxu0 0
        %462 = vmatpush1.bf16.xpose.msra.mxu0 0
        %463 = vmatprep.subr.bf16.mxu0 0
        %464 = vmatpush1.bf16.xpose.msra.mxu0 0
        %465 = vmatprep.subr.bf16.mxu0 0
        %466 = vmatpush1.bf16.xpose.msra.mxu0 0
        %467 = vmatprep.subr.bf16.mxu0 0
        %468 = vmatpush1.bf16.xpose.msra.mxu0 0
        %469 = vmatprep.subr.bf16.mxu0 0
        %470 = vmatpush1.bf16.xpose.msra.mxu0 0
        %471 = vmatprep.subr.bf16.mxu0 0
        %472 = vmatpush1.bf16.xpose.msra.mxu0 0
        %473 = vmatprep.subr.bf16.mxu0 0
        %474 = vmatpush1.bf16.xpose.msra.mxu0 0
        %475 = vmatprep.subr.bf16.mxu0 0
        %476 = vmatpush1.bf16.xpose.msra.mxu0 0
        %477 = vmatprep.subr.bf16.mxu0 0
        %478 = vmatpush1.bf16.xpose.msra.mxu0 0
        %479 = vmatprep.subr.bf16.mxu0 0
        %480 = vmatpush1.bf16.xpose.msra.mxu0 0
        %481 = vmatprep.subr.bf16.mxu0 0
        %482 = vmatpush1.bf16.xpose.msra.mxu0 0
        %483 = vmatprep.mubr.bf16.mxu0 0
        %484 = vmatmul.mubr.bf16.gmra.mrb[0].mxu0 %v449
        %v485 = vpop.f32.mrb[0].mxu0
        %v486 = vadd.f32 0.0, %v485
        %v487 = vpop.f32.mrb[0].mxu0
        %v488 = vpop.f32.mrb[0].mxu0
        %v489 = vpop.f32.mrb[0].mxu0
        %490 = vdwg.mxu0
        %vm491 = vcmask 64512
        %v492 = vsel %vm491, %v486, -inf
        %493 = vmax.xlane.f32.xlu0 %v492
        %v494 = vpop.xlane.xlu0 %493
        %v495 = vsub.f32 %v486, %v494
        %v496 = vmul.f32 %v495, 1.442695
        %v497 = vpow.pop %v496
        %v498 = vsel %vm491, %v497, 0.0
        %499 = vadd.xlane.f32.xlu0 %v498
        %v500 = vpop.xlane.xlu0 %499
        %v501 = vpack.c.bf16 %v497, %v497
        %v502 = vpack.c.bf16 %v444, %v444
        %v504 = vsel %vm491, %v501, 0
        %vm506 = vcmask 1043456
        %v508 = vsel %vm506, %v502, 0
        %510 = vmatprep.subr.bf16.mxu0 0
        %511 = vmatpush1.bf16.msra.mxu0 %v508
        %512 = vmatprep.subr.bf16.mxu0 0
        %513 = vmatpush1.bf16.msra.mxu0 0
        %514 = vmatprep.subr.bf16.mxu0 0
        %515 = vmatpush1.bf16.msra.mxu0 0
        %516 = vmatprep.subr.bf16.mxu0 0
        %517 = vmatpush1.bf16.msra.mxu0 0
        %518 = vmatprep.subr.bf16.mxu0 0
        %519 = vmatpush1.bf16.msra.mxu0 0
        %520 = vmatprep.subr.bf16.mxu0 0
        %521 = vmatpush1.bf16.msra.mxu0 0
        %522 = vmatprep.subr.bf16.mxu0 0
        %523 = vmatpush1.bf16.msra.mxu0 0
        %524 = vmatprep.subr.bf16.mxu0 0
        %525 = vmatpush1.bf16.msra.mxu0 0
        %526 = vmatprep.subr.bf16.mxu0 0
        %527 = vmatpush1.bf16.msra.mxu0 0
        %528 = vmatprep.subr.bf16.mxu0 0
        %529 = vmatpush1.bf16.msra.mxu0 0
        %530 = vmatprep.subr.bf16.mxu0 0
        %531 = vmatpush1.bf16.msra.mxu0 0
        %532 = vmatprep.subr.bf16.mxu0 0
        %533 = vmatpush1.bf16.msra.mxu0 0
        %534 = vmatprep.subr.bf16.mxu0 0
        %535 = vmatpush1.bf16.msra.mxu0 0
        %536 = vmatprep.subr.bf16.mxu0 0
        %537 = vmatpush1.bf16.msra.mxu0 0
        %538 = vmatprep.subr.bf16.mxu0 0
        %539 = vmatpush1.bf16.msra.mxu0 0
        %540 = vmatprep.subr.bf16.mxu0 0
        %541 = vmatpush1.bf16.msra.mxu0 0
        %542 = vmatprep.mubr.bf16.mxu0 0
        %543 = vmatmul.mubr.bf16.gmra.mrb[0].mxu0 %v504
        %v544 = vpop.f32.mrb[0].mxu0
        %v545 = vadd.f32 0.0, %v544
        %v546 = vpop.f32.mrb[0].mxu0
        %v547 = vpop.f32.mrb[0].mxu0
        %v548 = vpop.f32.mrb[0].mxu0
        %549 = vdwg.mxu0
        %v550 = vrcp.pop %v500
        %v551 = vmul.f32 1.0, %v550
        %v552 = vmul.f32 %v545, %v551
        %v553 = vadd.f32 %v552, %v403
        %554 = vadd.xlane.f32.xlu0 %v553
        %v555 = vpop.xlane.xlu0 %554
        %v556 = vrot.slane %v555, 4
        %v557 = vadd.f32 %v555, %v556
        %v558 = vrot.slane %v557, 2
        %v559 = vadd.f32 %v557, %v558
        %v560 = vrot.slane %v559, 1
        %v561 = vadd.f32 %v559, %v560
        %v562 = vmul.f32 %v553, %v553
        %563 = vadd.xlane.f32.xlu0 %v562
        %v564 = vpop.xlane.xlu0 %563
        %v565 = vrot.slane %v564, 4
        %v566 = vadd.f32 %v564, %v565
        %v567 = vrot.slane %v566, 2
        %v568 = vadd.f32 %v566, %v567
        %v569 = vrot.slane %v568, 1
        %v570 = vadd.f32 %v568, %v569
        %v571 = vrcp.pop 512.0
        %v572 = vmul.f32 %v561, %v571
        %v573 = vmul.f32 %v570, %v571
        %v574 = vmul.f32 %v572, %v572
        %v575 = vsub.f32 %v573, %v574
        %v576 = vmax.f32 %v575, 0.0
        %v577 = vsub.f32 %v553, %v572
        %v578 = vadd.f32 %v576, 1e-05
        %v579 = vrsqrt.pop %v578
        %v580 = vmul.f32 %v577, %v579
        %v581 = vmul.f32 %v580, %v309
        %v582 = vpack.c.bf16 %v581, %v581
        %v583 = vld [vmem:[#allocation2] sm:$0xf]
        %v584 = vld [vmem:[#allocation2 + $0x4] sm:$0xf]
        %v585 = vld [vmem:[#allocation2 + $0x8] sm:$0xf]
        %v586 = vld [vmem:[#allocation2 + $0xc] sm:$0xf]
        %v587 = vld [vmem:[#allocation2 + $0x10] sm:$0xf]
        %v588 = vld [vmem:[#allocation2 + $0x14] sm:$0xf]
        %v589 = vld [vmem:[#allocation2 + $0x18] sm:$0xf]
        %v590 = vld [vmem:[#allocation2 + $0x1c] sm:$0xf]
        %v591 = vld [vmem:[#allocation2 + $0x20] sm:$0xf]
        %v592 = vld [vmem:[#allocation2 + $0x24] sm:$0xf]
        %v593 = vld [vmem:[#allocation2 + $0x28] sm:$0xf]
        %v594 = vld [vmem:[#allocation2 + $0x2c] sm:$0xf]
        %v595 = vld [vmem:[#allocation2 + $0x30] sm:$0xf]
        %v596 = vld [vmem:[#allocation2 + $0x34] sm:$0xf]
        %v597 = vld [vmem:[#allocation2 + $0x38] sm:$0xf]
        %v598 = vld [vmem:[#allocation2 + $0x3c] sm:$0xf]
        %v599 = vld [vmem:[%s4] sm:$0x1]
        %v601 = vlaneseq
        %v602 = vshrl.u32 %v601, 7
        %v603 = vsub.s32 0, %v602
        %v604 = vrot.slane %v599, %v603
        %v622 = vunpack.c.l.b16 %v583
        %v623 = vunpack.c.l.b16 %v584
        %v624 = vunpack.c.l.b16 %v585
        %v625 = vunpack.c.l.b16 %v586
        %v626 = vunpack.c.l.b16 %v587
        %v627 = vunpack.c.l.b16 %v588
        %v628 = vunpack.c.l.b16 %v589
        %v629 = vunpack.c.l.b16 %v590
        %v630 = vunpack.c.l.b16 %v591
        %v631 = vunpack.c.l.b16 %v592
        %v632 = vunpack.c.l.b16 %v593
        %v633 = vunpack.c.l.b16 %v594
        %v634 = vunpack.c.l.b16 %v595
        %v635 = vunpack.c.l.b16 %v596
        %v636 = vunpack.c.l.b16 %v597
        %v637 = vunpack.c.l.b16 %v598
        %v638 = vpack.c.b16 %v623, %v622
        %v639 = vpack.c.b16 %v625, %v624
        %v640 = vpack.c.b16 %v627, %v626
        %v641 = vpack.c.b16 %v629, %v628
        %v642 = vpack.c.b16 %v631, %v630
        %v643 = vpack.c.b16 %v633, %v632
        %v644 = vpack.c.b16 %v635, %v634
        %v645 = vpack.c.b16 %v637, %v636
        %654 = vmatprep.subr.bf16.mxu0 0
        %655 = vmatpush1.bf16.msra.mxu0 %v638
        %656 = vmatprep.subr.bf16.mxu0 0
        %657 = vmatpush1.bf16.msra.mxu0 %v639
        %658 = vmatprep.subr.bf16.mxu0 0
        %659 = vmatpush1.bf16.msra.mxu0 %v640
        %660 = vmatprep.subr.bf16.mxu0 0
        %661 = vmatpush1.bf16.msra.mxu0 %v641
        %662 = vmatprep.subr.bf16.mxu0 0
        %663 = vmatpush1.bf16.msra.mxu0 %v642
        %664 = vmatprep.subr.bf16.mxu0 0
        %665 = vmatpush1.bf16.msra.mxu0 %v643
        %666 = vmatprep.subr.bf16.mxu0 0
        %667 = vmatpush1.bf16.msra.mxu0 %v644
        %668 = vmatprep.subr.bf16.mxu0 0
        %669 = vmatpush1.bf16.msra.mxu0 %v645
        %670 = vmatprep.subr.bf16.mxu0 0
        %671 = vmatpush1.bf16.msra.mxu0 0
        %672 = vmatprep.subr.bf16.mxu0 0
        %673 = vmatpush1.bf16.msra.mxu0 0
        %674 = vmatprep.subr.bf16.mxu0 0
        %675 = vmatpush1.bf16.msra.mxu0 0
        %676 = vmatprep.subr.bf16.mxu0 0
        %677 = vmatpush1.bf16.msra.mxu0 0
        %678 = vmatprep.subr.bf16.mxu0 0
        %679 = vmatpush1.bf16.msra.mxu0 0
        %680 = vmatprep.subr.bf16.mxu0 0
        %681 = vmatpush1.bf16.msra.mxu0 0
        %682 = vmatprep.subr.bf16.mxu0 0
        %683 = vmatpush1.bf16.msra.mxu0 0
        %684 = vmatprep.subr.bf16.mxu0 0
        %685 = vmatpush1.bf16.msra.mxu0 0
        %686 = vmatprep.mubr.bf16.mxu0 0
        %687 = vmatmul.mubr.bf16.gmra.mrb[0].mxu0 %v582
        %v688 = vpop.f32.mrb[0].mxu0
        %v689 = vadd.f32 %v604, %v688
        %v690 = vpop.f32.mrb[0].mxu0
        %v691 = vpop.f32.mrb[0].mxu0
        %v692 = vpop.f32.mrb[0].mxu0
        %693 = vdwg.mxu0
        %v694 = vmax.f32 %v689, 0.0
        %v695 = vpack.c.bf16 %v694, %v694
        %v696 = vld [vmem:[#allocation5] sm:$0xf]
        %v697 = vld [vmem:[#allocation5 + $0x4] sm:$0xf]
        %v698 = vld [vmem:[#allocation5 + $0x8] sm:$0xf]
        %v699 = vld [vmem:[#allocation5 + $0xc] sm:$0xf]
        %v700 = vld [vmem:[#allocation5 + $0x10] sm:$0xf]
        %v701 = vld [vmem:[#allocation5 + $0x14] sm:$0xf]
        %v702 = vld [vmem:[#allocation5 + $0x18] sm:$0xf]
        %v703 = vld [vmem:[#allocation5 + $0x1c] sm:$0xf]
        %v704 = vld [vmem:[#allocation5 + $0x20] sm:$0xf]
        %v705 = vld [vmem:[#allocation5 + $0x24] sm:$0xf]
        %v706 = vld [vmem:[#allocation5 + $0x28] sm:$0xf]
        %v707 = vld [vmem:[#allocation5 + $0x2c] sm:$0xf]
        %v708 = vld [vmem:[#allocation5 + $0x30] sm:$0xf]
        %v709 = vld [vmem:[#allocation5 + $0x34] sm:$0xf]
        %v710 = vld [vmem:[#allocation5 + $0x38] sm:$0xf]
        %v711 = vld [vmem:[#allocation5 + $0x3c] sm:$0xf]
        %v712 = vld [vmem:[%s6] sm:$0x1]
        %v714 = vlaneseq
        %v715 = vshrl.u32 %v714, 7
        %v716 = vsub.s32 0, %v715
        %v717 = vrot.slane %v712, %v716
        %v735 = vunpack.c.l.b16 %v696
        %v736 = vunpack.c.l.b16 %v697
        %v737 = vunpack.c.l.b16 %v698
        %v738 = vunpack.c.l.b16 %v699
        %v739 = vunpack.c.l.b16 %v700
        %v740 = vunpack.c.l.b16 %v701
        %v741 = vunpack.c.l.b16 %v702
        %v742 = vunpack.c.l.b16 %v703
        %v743 = vunpack.c.l.b16 %v704
        %v744 = vunpack.c.l.b16 %v705
        %v745 = vunpack.c.l.b16 %v706
        %v746 = vunpack.c.l.b16 %v707
        %v747 = vunpack.c.l.b16 %v708
        %v748 = vunpack.c.l.b16 %v709
        %v749 = vunpack.c.l.b16 %v710
        %v750 = vunpack.c.l.b16 %v711
        %v751 = vpack.c.b16 %v736, %v735
        %v752 = vpack.c.b16 %v738, %v737
        %v753 = vpack.c.b16 %v740, %v739
        %v754 = vpack.c.b16 %v742, %v741
        %v755 = vpack.c.b16 %v744, %v743
        %v756 = vpack.c.b16 %v746, %v745
        %v757 = vpack.c.b16 %v748, %v747
        %v758 = vpack.c.b16 %v750, %v749
        %767 = vmatprep.subr.bf16.mxu0 0
        %768 = vmatpush1.bf16.msra.mxu0 %v751
        %769 = vmatprep.subr.bf16.mxu0 0
        %770 = vmatpush1.bf16.msra.mxu0 %v752
        %771 = vmatprep.subr.bf16.mxu0 0
        %772 = vmatpush1.bf16.msra.mxu0 %v753
        %773 = vmatprep.subr.bf16.mxu0 0
        %774 = vmatpush1.bf16.msra.mxu0 %v754
        %775 = vmatprep.subr.bf16.mxu0 0
        %776 = vmatpush1.bf16.msra.mxu0 %v755
        %777 = vmatprep.subr.bf16.mxu0 0
        %778 = vmatpush1.bf16.msra.mxu0 %v756
        %779 = vmatprep.subr.bf16.mxu0 0
        %780 = vmatpush1.bf16.msra.mxu0 %v757
        %781 = vmatprep.subr.bf16.mxu0 0
        %782 = vmatpush1.bf16.msra.mxu0 %v758
        %783 = vmatprep.subr.bf16.mxu0 0
        %784 = vmatpush1.bf16.msra.mxu0 0
        %785 = vmatprep.subr.bf16.mxu0 0
        %786 = vmatpush1.bf16.msra.mxu0 0
        %787 = vmatprep.subr.bf16.mxu0 0
        %788 = vmatpush1.bf16.msra.mxu0 0
        %789 = vmatprep.subr.bf16.mxu0 0
        %790 = vmatpush1.bf16.msra.mxu0 0
        %791 = vmatprep.subr.bf16.mxu0 0
        %792 = vmatpush1.bf16.msra.mxu0 0
        %793 = vmatprep.subr.bf16.mxu0 0
        %794 = vmatpush1.bf16.msra.mxu0 0
        %795 = vmatprep.subr.bf16.mxu0 0
        %796 = vmatpush1.bf16.msra.mxu0 0
        %797 = vmatprep.subr.bf16.mxu0 0
        %798 = vmatpush1.bf16.msra.mxu0 0
        %799 = vmatprep.mubr.bf16.mxu0 0
        %800 = vmatmul.mubr.bf16.gmra.mrb[0].mxu0 %v695
        %v801 = vpop.f32.mrb[0].mxu0
        %v802 = vadd.f32 %v717, %v801
        %v803 = vpop.f32.mrb[0].mxu0
        %v804 = vpop.f32.mrb[0].mxu0
        %v805 = vpop.f32.mrb[0].mxu0
        %806 = vdwg.mxu0
        %v807 = vadd.f32 %v581, %v802
        %808 = vadd.xlane.f32.xlu0 %v807
        %v809 = vpop.xlane.xlu0 %808
        %v810 = vrot.slane %v809, 4
        %v811 = vadd.f32 %v809, %v810
        %v812 = vrot.slane %v811, 2
        %v813 = vadd.f32 %v811, %v812
        %v814 = vrot.slane %v813, 1
        %v815 = vadd.f32 %v813, %v814
        %v816 = vmul.f32 %v807, %v807
        %817 = vadd.xlane.f32.xlu0 %v816
        %v818 = vpop.xlane.xlu0 %817
        %v819 = vrot.slane %v818, 4
        %v820 = vadd.f32 %v818, %v819
        %v821 = vrot.slane %v820, 2
        %v822 = vadd.f32 %v820, %v821
        %v823 = vrot.slane %v822, 1
        %v824 = vadd.f32 %v822, %v823
        %v825 = vmul.f32 %v815, %v571
        %v826 = vmul.f32 %v824, %v571
        %v827 = vmul.f32 %v825, %v825
        %v828 = vsub.f32 %v826, %v827
        %v829 = vmax.f32 %v828, 0.0
        %v830 = vsub.f32 %v807, %v825
        %v831 = vadd.f32 %v829, 1e-05
        %v832 = vrsqrt.pop %v831
        %v833 = vmul.f32 %v830, %v832
        %v834 = vmul.f32 %v833, %v309
        %835 = vst [vmem:[%s299] sm:$0xff] %v834
        %s836 = sand.u32 %s183, 1
        %s837 = scalar_lea.sflag [#allocation4], %s836
        %s838 = sand.u32 %s183, 1
        %s839 = smul.addr %s838, 8
        %s840 = scalar_lea.vmem [#allocation7], %s839
        // Predicated region
        $region57: #{tpu_custom_call.1} parent=47 // pred_check
          %p841 = pneg %p193
        $region58: #{tpu_custom_call.1} parent=47 // pred_check_branch
          %843 = sbr.rel (%p841) target = $region60
        $region59: #{tpu_custom_call.1} parent=47 // pred_region
          %s845 = ssub.s32 128, 128
          %846 = vsyncadd %s837, %s845
          %s847 = smul.addr %s23, 128
          %s848 = scalar_lea.hbm %s7, %s847
          %s850 = sshll.u32 %s840, 4
          %s851 = int_to_ptr.vmem [resolvable:$true] %s850
          %853 = dma.vmem_to_hbm [thread:$0]  %s851, 128, %s848, %s837
        $region60: #{tpu_custom_call.1} parent=47 // pred_fallthru
          _
      $region48: #{tpu_custom_call.1} parent=5 // pred_fallthru
        _
      %p854 = scmp.le.s32.totalorder 2, %s18
      // Predicated region
      $region61: #{tpu_custom_call.1} parent=5 // pred_check
        %p855 = pneg %p854
      $region62: #{tpu_custom_call.1} parent=5 // pred_check_branch
        %857 = sbr.rel (%p855) target = $region64
      $region63: #{tpu_custom_call.1} parent=5 // pred_region
        %s858 = ssub.s32 %s18, 2
        // Predicated region
        $region65: #{tpu_custom_call.1} parent=63 // pred_check
          %p859 = pneg %p199
        $region66: #{tpu_custom_call.1} parent=63 // pred_check_branch
          %861 = sbr.rel (%p859) target = $region68
        $region67: #{tpu_custom_call.1} parent=63 // pred_region
          %s862 = sand.u32 %s184, 1
          %s863 = scalar_lea.sflag [#allocation4], %s862
          %s864 = sand.u32 %s184, 1
          %s865 = smul.addr %s864, 8
          %s866 = scalar_lea.vmem [#allocation7], %s865
          %867 = dma.done %s863, 128
        $region68: #{tpu_custom_call.1} parent=63 // pred_fallthru
          _
      $region64: #{tpu_custom_call.1} parent=5 // pred_fallthru
        _
    $region6: #{tpu_custom_call.1} parent=1 // loop_footer
      %s22 = sadd.s32 1, %s18
    $region7: #{tpu_custom_call.1} parent=1 // loop_footer_branch
      %17 = sbr.rel target = $region3
    $region8: #{tpu_custom_call.1} parent=1 // loop_exit
      _
    %868 = vsyncpa [#allocation3], 1
    %s869 = scalar_lea.sflag [#allocation3], 1
    %870 = vsyncpa %s869, 1
    %871 = vsyncpa [#allocation6], 1
    %872 = vsyncpa [#allocation4], 1
    %s873 = scalar_lea.sflag [#allocation4], 1
    %874 = vsyncpa %s873, 1

</llo_original>
